<compile_context>
chip_gen: v5e
topology: v5e:2x2
jax: 0.10.0
libtpu: 0.0.40
codegen_flags: <defaults>
</compile_context>

<pallas_src>
import numpy as np
import jax
import jax.numpy as jnp
from jax.experimental import pallas as pl
from jax.experimental.pallas import tpu as pltpu


def decoder_kernel(embk_ref,                                   # (1, B, 2H) [emb | keep]
                   bias_ref, h0_ref, c0_ref, src_h_ref,
                   w_gates_ref, b_gates_ref, who_ref, b_ho_ref,
                   wout_t_ref, b_out_ref,
                   out_ref, state_out_ref,
                   h_scr, c_scr):
    t = pl.program_id(0)
    B, H = h_scr.shape

    # --- initialize the carried recurrent state on the first step ---
    @pl.when(t == 0)
    def _():
        h_scr[...] = h0_ref[...]
        c_scr[...] = c0_ref[...]

    h_prev = h_scr[...]                                        # (B, H) f32
    c_prev = c_scr[...]                                        # (B, H) f32

    # --- per-step input: embedding row + keep mask, one lane-dense block ---
    emb_keep = embk_ref[0]                                     # (B, 2H) f32
    embedded = emb_keep[:, :H]                                 # (B, H)
    keep = emb_keep[:, H:]                                     # (B, H) {0,1}

    # --- LSTMCell: fused K=2H gate matmul; PyTorch gate order [i, f, g, o] ---
    x = jnp.concatenate([embedded, h_prev], axis=-1).astype(jnp.bfloat16)   # (B, 2H)
    gates = (jnp.dot(x, w_gates_ref[...], preferred_element_type=jnp.float32)
             + b_gates_ref[...])                               # (B, 4H) f32
    i_g = jax.nn.sigmoid(gates[:, 0 * H:1 * H])
    f_g = jax.nn.sigmoid(gates[:, 1 * H:2 * H])
    g_g = jnp.tanh(gates[:, 2 * H:3 * H])
    o_g = jax.nn.sigmoid(gates[:, 3 * H:4 * H])
    cell = f_g * c_prev + i_g * g_g
    hidden = o_g * jnp.tanh(cell)

    # --- keep previous state where the decoder input token is PAD (== 0) ---
    hidden = keep * hidden + (1.0 - keep) * h_prev
    cell = keep * cell + (1.0 - keep) * c_prev

    # --- attention: stay in sublane orientation (B, S, 1) throughout ---
    src_h = src_h_ref[...]                                     # (B, S, H) f32
    scores = jnp.sum(src_h * hidden[:, None, :], axis=-1, keepdims=True)   # (B,S,1)
    scores = scores + bias_ref[...]                            # additive -1e30 mask
    m = jnp.max(scores, axis=1, keepdims=True)                 # (B,1,1)
    e = jnp.exp(scores - m)                                    # (B,S,1)
    denom = jnp.sum(e, axis=1, keepdims=True)                  # (B,1,1)
    align = e * pl.reciprocal(denom, approx=True)              # softmax over S
    context = jnp.sum(src_h * align, axis=1)                   # (B, H)

    # --- output head: fused (B,2H) @ (2H,H), then (B,H) @ (H,V) ---
    ch = jnp.concatenate([context, hidden], axis=-1).astype(jnp.bfloat16)   # (B, 2H)
    attn_h = jnp.tanh(
        jnp.dot(ch, who_ref[...], preferred_element_type=jnp.float32)
        + b_ho_ref[...])                                       # (B, H) f32
    logits = (jnp.dot(attn_h.astype(jnp.bfloat16), wout_t_ref[...],
                      preferred_element_type=jnp.float32)
              + b_out_ref[...])                                # (B, V) f32
    lm = jnp.max(logits, axis=1, keepdims=True)
    lse = jnp.log(jnp.sum(jnp.exp(logits - lm), axis=1, keepdims=True)) + lm

    out_ref[0] = logits - lse                                  # log-softmax
    state_out_ref[0] = jnp.concatenate([attn_h, cell], axis=-1)  # (B, 2H) single store

    # --- carry the module's returned state (attn_hidden, cell) to next step ---
    h_scr[...] = attn_h
    c_scr[...] = cell


@jax.jit
def attention_decoder_lstm_fused(ids_seq, src_ids, h0, c0, src_h, params):
    """Run T decoder steps fused in one gridded pallas_call.

    ids_seq : (T, B) int32 decoder input tokens per step (0 == PAD)
    Returns (out (T,B,V) log-probs, attn_hidden (T,B,H), cell (T,B,H)).
    """
    T, B = ids_seq.shape
    H = h0.shape[1]
    V = params['emb'].shape[0]
    S = src_ids.shape[1]

    ids_seq = ids_seq.astype(jnp.int32)

    # Hoisted embedding gather + keep mask, packed into one lane-dense block.
    embedded_seq = params['emb'][ids_seq]                      # (T, B, H) f32
    keep_seq = jnp.broadcast_to(
        (ids_seq != 0).astype(jnp.float32)[:, :, None], (T, B, H))
    emb_keep = jnp.concatenate([embedded_seq, keep_seq], axis=-1)   # (T, B, 2H)

    # Additive attention mask, sublane-oriented (B, S, 1).
    attn_bias = jnp.where(src_ids != 0, 0.0, -1e30).astype(jnp.float32)[:, :, None]

    # Kernel-side weight forms: fused bf16 matmul operands.
    w_gates_bf = jnp.concatenate(
        [params['wih_t'], params['whh_t']], axis=0).astype(jnp.bfloat16)   # (2H, 4H)
    who_bf = params['who_t'].astype(jnp.bfloat16)              # (2H, H)
    wout_bf = params['wout_t'].astype(jnp.bfloat16)            # (H, V)

    const2 = lambda t: (0, 0)
    const3 = lambda t: (0, 0, 0)
    step3 = lambda t: (t, 0, 0)

    grid_spec = pltpu.PrefetchScalarGridSpec(
        num_scalar_prefetch=0,
        grid=(T,),
        in_specs=[
            pl.BlockSpec((1, B, 2 * H), step3),    # [embedded | keep] per step
            pl.BlockSpec((B, S, 1), const3),       # additive attention bias
            pl.BlockSpec((B, H), const2),          # h0
            pl.BlockSpec((B, H), const2),          # c0
            pl.BlockSpec((B, S, H), const3),       # source hiddens (resident)
            pl.BlockSpec((2 * H, 4 * H), const2),  # [W_ih^T; W_hh^T] bf16
            pl.BlockSpec((1, 4 * H), const2),      # b_ih + b_hh
            pl.BlockSpec((2 * H, H), const2),      # hidden_out^T bf16
            pl.BlockSpec((1, H), const2),          # b_ho
            pl.BlockSpec((H, V), const2),          # W_out^T bf16
            pl.BlockSpec((1, V), const2),          # b_out
        ],
        out_specs=(
            pl.BlockSpec((1, B, V), step3),        # log-probs
            pl.BlockSpec((1, B, 2 * H), step3),    # [attn_hidden | cell]
        ),
        scratch_shapes=[pltpu.VMEM((B, H), jnp.float32),       # carried hidden
                        pltpu.VMEM((B, H), jnp.float32)],      # carried cell
    )

    out_shapes = (jax.ShapeDtypeStruct((T, B, V), jnp.float32),
                  jax.ShapeDtypeStruct((T, B, 2 * H), jnp.float32))

    out, state = pl.pallas_call(
        decoder_kernel,
        out_shape=out_shapes,
        grid_spec=grid_spec,
        compiler_params=pltpu.CompilerParams(
            dimension_semantics=("arbitrary",)),
    )(emb_keep, attn_bias, h0, c0, src_h,
      w_gates_bf, params['b_gates'], who_bf, params['b_ho'],
      wout_bf, params['b_out'])

    attn_h = state[:, :, :H]
    cell = state[:, :, H:]
    return out, attn_h, cell


def reference(ids_seq, src_ids, h0, c0, src_h, p):
    """Pure-JAX (f32) mirror: the PyTorch forward applied T times, carrying
    (attn_hidden, cell) exactly like the fused kernel."""
    H = h0.shape[1]
    outs, attns, cells = [], [], []
    h, c = h0, c0
    for t in range(ids_seq.shape[0]):
        ids = ids_seq[t]
        embedded = p['emb'][ids]                               # padding row 0 is zero
        gates = embedded @ p['wih_t'] + h @ p['whh_t'] + p['b_gates']
        i = jax.nn.sigmoid(gates[:, :H])
        f = jax.nn.sigmoid(gates[:, H:2 * H])
        g = jnp.tanh(gates[:, 2 * H:3 * H])
        o = jax.nn.sigmoid(gates[:, 3 * H:])
        cell = f * c + i * g
        hidden = o * jnp.tanh(cell)
        keep = (ids != 0)[:, None]
        hidden = jnp.where(keep, hidden, h)
        cell = jnp.where(keep, cell, c)
        scores = jnp.einsum('bh,bsh->bs', hidden, src_h)
        scores = jnp.where(src_ids != 0, scores, -jnp.inf)
        align = jax.nn.softmax(scores, axis=1)
        context = jnp.einsum('bs,bsh->bh', align, src_h)
        attn_h = jnp.tanh(jnp.concatenate([context, hidden], axis=1)
                          @ p['who_t'] + p['b_ho'])
        logits = attn_h @ p['wout_t'] + p['b_out']
        outs.append(jax.nn.log_softmax(logits, axis=1))
        attns.append(attn_h)
        cells.append(cell)
        h, c = attn_h, cell
    return jnp.stack(outs), jnp.stack(attns), jnp.stack(cells)


def make_params(key, hidden_size, dict_size):
    H, V = hidden_size, dict_size
    ks = jax.random.split(key, 10)
    u = lambda k, shape, s=0.08: jax.random.uniform(k, shape, jnp.float32, -s, s)
    emb = u(ks[0], (V, H))
    emb = emb.at[0].set(0.0)                     # padding_idx = PAD = 0
    w_ih = u(ks[1], (4 * H, H))                  # PyTorch LSTMCell weight_ih
    w_hh = u(ks[2], (4 * H, H))                  # PyTorch LSTMCell weight_hh
    b_ih = u(ks[3], (4 * H,))
    b_hh = u(ks[4], (4 * H,))
    w_ho = u(ks[5], (H, 2 * H))                  # hidden_out: Linear(2H -> H)
    b_ho = u(ks[6], (H,))
    w_out = u(ks[7], (V, H))                     # out: Linear(H -> V)
    b_out = u(ks[8], (V,))
    return {
        'emb': emb,
        'wih_t': w_ih.T,                         # (H, 4H)
        'whh_t': w_hh.T,                         # (H, 4H)
        'b_gates': (b_ih + b_hh).reshape(1, 4 * H),
        'who_t': w_ho.T,                         # (2H, H)
        'b_ho': b_ho.reshape(1, H),
        'wout_t': w_out.T,                       # (H, V)
        'b_out': b_out.reshape(1, V),
    }


if __name__ == "__main__":
    PAD = 0
    T, B, S, H, V = 4, 8, 16, 128, 256

    key = jax.random.PRNGKey(0)
    kp, k1, k2, k3, k4, k5 = jax.random.split(key, 6)

    params = make_params(kp, H, V)

    ids_seq = jax.random.randint(k1, (T, B), 1, V, dtype=jnp.int32)
    ids_seq = ids_seq.at[1, 1].set(PAD)                       # exercise PAD-keep path
    ids_seq = ids_seq.at[2, 4].set(PAD)
    src_ids = jax.random.randint(k2, (B, S), 1, V, dtype=jnp.int32)
    src_ids = src_ids.at[:, S - 3:].set(PAD)                  # padded source tail
    pre_hidden = jax.random.normal(k3, (B, H), jnp.float32) * 0.1
    pre_cell = jax.random.normal(k4, (B, H), jnp.float32) * 0.1
    source_hiddens = jax.random.normal(k5, (B, S, H), jnp.float32) * 0.1

    out, attn_h, cell = attention_decoder_lstm_fused(
        ids_seq, src_ids, pre_hidden, pre_cell, source_hiddens, params)
    jax.block_until_ready((out, attn_h, cell))

    ref_out, ref_attn_h, ref_cell = reference(
        ids_seq, src_ids, pre_hidden, pre_cell, source_hiddens, params)

    assert np.allclose(np.asarray(out), np.asarray(ref_out), atol=1e-2, rtol=1e-2)
    assert np.allclose(np.asarray(attn_h), np.asarray(ref_attn_h), atol=1e-2, rtol=1e-2)
    assert np.allclose(np.asarray(cell), np.asarray(ref_cell), atol=1e-2, rtol=1e-2)

    print("KERNEL_OK")
</pallas_src>

<mosaic_0001>
module attributes {stable_mosaic.version = 11 : i64} {
  func.func @decoder_kernel(%arg0: i32, %arg1: memref<1x8x256xf32, #tpu.memory_space<vmem>>, %arg2: memref<8x16x1xf32, #tpu.memory_space<vmem>>, %arg3: memref<8x128xf32, #tpu.memory_space<vmem>>, %arg4: memref<8x128xf32, #tpu.memory_space<vmem>>, %arg5: memref<8x16x128xf32, #tpu.memory_space<vmem>>, %arg6: memref<256x512xbf16, #tpu.memory_space<vmem>>, %arg7: memref<1x512xf32, #tpu.memory_space<vmem>>, %arg8: memref<256x128xbf16, #tpu.memory_space<vmem>>, %arg9: memref<1x128xf32, #tpu.memory_space<vmem>>, %arg10: memref<128x256xbf16, #tpu.memory_space<vmem>>, %arg11: memref<1x256xf32, #tpu.memory_space<vmem>>, %arg12: memref<1x8x256xf32, #tpu.memory_space<vmem>>, %arg13: memref<1x8x256xf32, #tpu.memory_space<vmem>>, %arg14: memref<8x128xf32, #tpu.memory_space<vmem>>, %arg15: memref<8x128xf32, #tpu.memory_space<vmem>>) attributes {dimension_semantics = [#tpu.dimension_semantics<arbitrary>], iteration_bounds = array<i64: 4>, scalar_prefetch = 0 : i64, scratch_operands = 2 : i64, tpu.core_type = #tpu.core_type<tc>, window_params = [{transform_indices = @transform_0, window_bounds = array<i64: 1, 8, 256>}, {pipeline_mode = #tpu.pipeline_mode<synchronous>, transform_indices = @transform_1, window_bounds = array<i64: 8, 16, 1>}, {pipeline_mode = #tpu.pipeline_mode<synchronous>, transform_indices = @transform_2, window_bounds = array<i64: 8, 128>}, {pipeline_mode = #tpu.pipeline_mode<synchronous>, transform_indices = @transform_3, window_bounds = array<i64: 8, 128>}, {pipeline_mode = #tpu.pipeline_mode<synchronous>, transform_indices = @transform_4, window_bounds = array<i64: 8, 16, 128>}, {pipeline_mode = #tpu.pipeline_mode<synchronous>, transform_indices = @transform_5, window_bounds = array<i64: 256, 512>}, {pipeline_mode = #tpu.pipeline_mode<synchronous>, transform_indices = @transform_6, window_bounds = array<i64: 1, 512>}, {pipeline_mode = #tpu.pipeline_mode<synchronous>, transform_indices = @transform_7, window_bounds = array<i64: 256, 128>}, {pipeline_mode = #tpu.pipeline_mode<synchronous>, transform_indices = @transform_8, window_bounds = array<i64: 1, 128>}, {pipeline_mode = #tpu.pipeline_mode<synchronous>, transform_indices = @transform_9, window_bounds = array<i64: 128, 256>}, {pipeline_mode = #tpu.pipeline_mode<synchronous>, transform_indices = @transform_10, window_bounds = array<i64: 1, 256>}, {transform_indices = @transform_11, window_bounds = array<i64: 1, 8, 256>}, {transform_indices = @transform_12, window_bounds = array<i64: 1, 8, 256>}]} {
    %c0_i32 = arith.constant 0 : i32
    %0 = arith.cmpi eq, %arg0, %c0_i32 : i32
    %1 = arith.extui %0 : i1 to i32
    %c0_i32_0 = arith.constant 0 : i32
    %2 = arith.cmpi ne, %1, %c0_i32_0 : i32
    scf.if %2 {
      %c0_48 = arith.constant 0 : index
      %c0_49 = arith.constant 0 : index
      %106 = vector.load %arg3[%c0_48, %c0_49] : memref<8x128xf32, #tpu.memory_space<vmem>>, vector<8x128xf32>
      %c0_50 = arith.constant 0 : index
      %c0_51 = arith.constant 0 : index
      %107 = vector.load %arg14[%c0_50, %c0_51] : memref<8x128xf32, #tpu.memory_space<vmem>>, vector<8x128xf32>
      tpu.vector_store %arg14[%c0_50, %c0_51], %106 {strides = array<i32>} : memref<8x128xf32, #tpu.memory_space<vmem>>, vector<8x128xf32>,
      %c0_52 = arith.constant 0 : index
      %c0_53 = arith.constant 0 : index
      %108 = vector.load %arg4[%c0_52, %c0_53] : memref<8x128xf32, #tpu.memory_space<vmem>>, vector<8x128xf32>
      %c0_54 = arith.constant 0 : index
      %c0_55 = arith.constant 0 : index
      %109 = vector.load %arg15[%c0_54, %c0_55] : memref<8x128xf32, #tpu.memory_space<vmem>>, vector<8x128xf32>
      tpu.vector_store %arg15[%c0_54, %c0_55], %108 {strides = array<i32>} : memref<8x128xf32, #tpu.memory_space<vmem>>, vector<8x128xf32>,
    } else {
    }
    %c0 = arith.constant 0 : index
    %c0_1 = arith.constant 0 : index
    %3 = vector.load %arg14[%c0, %c0_1] : memref<8x128xf32, #tpu.memory_space<vmem>>, vector<8x128xf32>
    %c0_2 = arith.constant 0 : index
    %c0_3 = arith.constant 0 : index
    %4 = vector.load %arg15[%c0_2, %c0_3] : memref<8x128xf32, #tpu.memory_space<vmem>>, vector<8x128xf32>
    %c0_4 = arith.constant 0 : index
    %c0_5 = arith.constant 0 : index
    %c0_6 = arith.constant 0 : index
    %5 = vector.load %arg1[%c0_4, %c0_5, %c0_6] : memref<1x8x256xf32, #tpu.memory_space<vmem>>, vector<1x8x256xf32>
    %6 = vector.shape_cast %5 : vector<1x8x256xf32> to vector<8x256xf32>
    %7 = vector.extract_strided_slice %6 {offsets = [0, 0], sizes = [8, 128], strides = [1, 1]} : vector<8x256xf32> to vector<8x128xf32>
    %8 = vector.extract_strided_slice %6 {offsets = [0, 128], sizes = [8, 128], strides = [1, 1]} : vector<8x256xf32> to vector<8x128xf32>
    %9 = tpu.concatenate %7, %3 in 1 : vector<8x128xf32>, vector<8x128xf32> -> vector<8x256xf32>
    %10 = arith.truncf %9 : vector<8x256xf32> to vector<8x256xbf16>
    %c0_7 = arith.constant 0 : index
    %c0_8 = arith.constant 0 : index
    %11 = vector.load %arg6[%c0_7, %c0_8] : memref<256x512xbf16, #tpu.memory_space<vmem>>, vector<256x512xbf16>
    %cst = arith.constant dense<0.000000e+00> : vector<8x512xf32>
    %12 = tpu.matmul %10, %11, %cst {dimension_numbers = #tpu.dot_dimension_numbers<[1], [0], [0], [1], [0, 0, 1, 1], [], []>} : vector<8x256xbf16>, vector<256x512xbf16>, vector<8x512xf32> -> vector<8x512xf32>
    %c0_9 = arith.constant 0 : index
    %c0_10 = arith.constant 0 : index
    %13 = vector.load %arg7[%c0_9, %c0_10] : memref<1x512xf32, #tpu.memory_space<vmem>>, vector<1x512xf32>
    %14 = vector.broadcast %13 : vector<1x512xf32> to vector<8x512xf32>
    %15 = arith.addf %12, %14 : vector<8x512xf32>
    %16 = vector.extract_strided_slice %15 {offsets = [0, 0], sizes = [8, 128], strides = [1, 1]} : vector<8x512xf32> to vector<8x128xf32>
    %17 = arith.negf %16 : vector<8x128xf32>
    %18 = math.exp %17 : vector<8x128xf32>
    %cst_11 = arith.constant 1.000000e+00 : f32
    %19 = vector.broadcast %cst_11 : f32 to vector<8x128xf32>
    %20 = arith.addf %19, %18 : vector<8x128xf32>
    %21 = arith.divf %19, %20 : vector<8x128xf32>
    %22 = vector.extract_strided_slice %15 {offsets = [0, 128], sizes = [8, 128], strides = [1, 1]} : vector<8x512xf32> to vector<8x128xf32>
    %23 = arith.negf %22 : vector<8x128xf32>
    %24 = math.exp %23 : vector<8x128xf32>
    %cst_12 = arith.constant 1.000000e+00 : f32
    %25 = vector.broadcast %cst_12 : f32 to vector<8x128xf32>
    %26 = arith.addf %25, %24 : vector<8x128xf32>
    %27 = arith.divf %25, %26 : vector<8x128xf32>
    %28 = vector.extract_strided_slice %15 {offsets = [0, 256], sizes = [8, 128], strides = [1, 1]} : vector<8x512xf32> to vector<8x128xf32>
    %29 = math.tanh %28 : vector<8x128xf32>
    %30 = vector.extract_strided_slice %15 {offsets = [0, 384], sizes = [8, 128], strides = [1, 1]} : vector<8x512xf32> to vector<8x128xf32>
    %31 = arith.negf %30 : vector<8x128xf32>
    %32 = math.exp %31 : vector<8x128xf32>
    %cst_13 = arith.constant 1.000000e+00 : f32
    %33 = vector.broadcast %cst_13 : f32 to vector<8x128xf32>
    %34 = arith.addf %33, %32 : vector<8x128xf32>
    %35 = arith.divf %33, %34 : vector<8x128xf32>
    %36 = arith.mulf %27, %4 : vector<8x128xf32>
    %37 = arith.mulf %21, %29 : vector<8x128xf32>
    %38 = arith.addf %36, %37 : vector<8x128xf32>
    %39 = math.tanh %38 : vector<8x128xf32>
    %40 = arith.mulf %35, %39 : vector<8x128xf32>
    %41 = arith.mulf %8, %40 : vector<8x128xf32>
    %cst_14 = arith.constant 1.000000e+00 : f32
    %42 = vector.broadcast %cst_14 : f32 to vector<8x128xf32>
    %43 = arith.subf %42, %8 : vector<8x128xf32>
    %44 = arith.mulf %43, %3 : vector<8x128xf32>
    %45 = arith.addf %41, %44 : vector<8x128xf32>
    %46 = arith.mulf %8, %38 : vector<8x128xf32>
    %cst_15 = arith.constant 1.000000e+00 : f32
    %47 = vector.broadcast %cst_15 : f32 to vector<8x128xf32>
    %48 = arith.subf %47, %8 : vector<8x128xf32>
    %49 = arith.mulf %48, %4 : vector<8x128xf32>
    %50 = arith.addf %46, %49 : vector<8x128xf32>
    %c0_16 = arith.constant 0 : index
    %c0_17 = arith.constant 0 : index
    %c0_18 = arith.constant 0 : index
    %51 = vector.load %arg5[%c0_16, %c0_17, %c0_18] : memref<8x16x128xf32, #tpu.memory_space<vmem>>, vector<8x16x128xf32>
    %52 = vector.shape_cast %45 : vector<8x128xf32> to vector<8x1x128xf32>
    %53 = vector.broadcast %52 : vector<8x1x128xf32> to vector<8x16x128xf32>
    %54 = arith.mulf %51, %53 : vector<8x16x128xf32>
    %cst_19 = arith.constant dense<0.000000e+00> : vector<8x16xf32>
    %55 = vector.multi_reduction <add>, %54, %cst_19 [2] : vector<8x16x128xf32> to vector<8x16xf32>
    %56 = vector.shape_cast %55 : vector<8x16xf32> to vector<8x16x1xf32>
    %c0_20 = arith.constant 0 : index
    %c0_21 = arith.constant 0 : index
    %c0_22 = arith.constant 0 : index
    %57 = vector.load %arg2[%c0_20, %c0_21, %c0_22] : memref<8x16x1xf32, #tpu.memory_space<vmem>>, vector<8x16x1xf32>
    %58 = arith.addf %56, %57 : vector<8x16x1xf32>
    %cst_23 = arith.constant dense<0xFF800000> : vector<8x1xf32>
    %59 = vector.multi_reduction <maximumf>, %58, %cst_23 [1] : vector<8x16x1xf32> to vector<8x1xf32>
    %60 = vector.shape_cast %59 : vector<8x1xf32> to vector<8x1x1xf32>
    %61 = vector.broadcast %60 : vector<8x1x1xf32> to vector<8x16x1xf32>
    %62 = arith.subf %58, %61 : vector<8x16x1xf32>
    %63 = math.exp %62 : vector<8x16x1xf32>
    %cst_24 = arith.constant dense<0.000000e+00> : vector<8x1xf32>
    %64 = vector.multi_reduction <add>, %63, %cst_24 [1] : vector<8x16x1xf32> to vector<8x1xf32>
    %65 = vector.shape_cast %64 : vector<8x1xf32> to vector<8x1x1xf32>
    %66 = tpu.reciprocal %65 {approx = true} : vector<8x1x1xf32> -> vector<8x1x1xf32>
    %67 = vector.broadcast %66 : vector<8x1x1xf32> to vector<8x16x1xf32>
    %68 = arith.mulf %63, %67 : vector<8x16x1xf32>
    %69 = vector.broadcast %68 : vector<8x16x1xf32> to vector<8x16x128xf32>
    %70 = arith.mulf %51, %69 : vector<8x16x128xf32>
    %cst_25 = arith.constant dense<0.000000e+00> : vector<8x128xf32>
    %71 = vector.multi_reduction <add>, %70, %cst_25 [1] : vector<8x16x128xf32> to vector<8x128xf32>
    %72 = tpu.concatenate %71, %45 in 1 : vector<8x128xf32>, vector<8x128xf32> -> vector<8x256xf32>
    %73 = arith.truncf %72 : vector<8x256xf32> to vector<8x256xbf16>
    %c0_26 = arith.constant 0 : index
    %c0_27 = arith.constant 0 : index
    %74 = vector.load %arg8[%c0_26, %c0_27] : memref<256x128xbf16, #tpu.memory_space<vmem>>, vector<256x128xbf16>
    %cst_28 = arith.constant dense<0.000000e+00> : vector<8x128xf32>
    %75 = tpu.matmul %73, %74, %cst_28 {dimension_numbers = #tpu.dot_dimension_numbers<[1], [0], [0], [1], [0, 0, 1, 1], [], []>} : vector<8x256xbf16>, vector<256x128xbf16>, vector<8x128xf32> -> vector<8x128xf32>
    %c0_29 = arith.constant 0 : index
    %c0_30 = arith.constant 0 : index
    %76 = vector.load %arg9[%c0_29, %c0_30] : memref<1x128xf32, #tpu.memory_space<vmem>>, vector<1x128xf32>
    %77 = vector.broadcast %76 : vector<1x128xf32> to vector<8x128xf32>
    %78 = arith.addf %75, %77 : vector<8x128xf32>
    %79 = math.tanh %78 : vector<8x128xf32>
    %80 = arith.truncf %79 : vector<8x128xf32> to vector<8x128xbf16>
    %c0_31 = arith.constant 0 : index
    %c0_32 = arith.constant 0 : index
    %81 = vector.load %arg10[%c0_31, %c0_32] : memref<128x256xbf16, #tpu.memory_space<vmem>>, vector<128x256xbf16>
    %cst_33 = arith.constant dense<0.000000e+00> : vector<8x256xf32>
    %82 = tpu.matmul %80, %81, %cst_33 {dimension_numbers = #tpu.dot_dimension_numbers<[1], [0], [0], [1], [0, 0, 1, 1], [], []>} : vector<8x128xbf16>, vector<128x256xbf16>, vector<8x256xf32> -> vector<8x256xf32>
    %c0_34 = arith.constant 0 : index
    %c0_35 = arith.constant 0 : index
    %83 = vector.load %arg11[%c0_34, %c0_35] : memref<1x256xf32, #tpu.memory_space<vmem>>, vector<1x256xf32>
    %84 = vector.broadcast %83 : vector<1x256xf32> to vector<8x256xf32>
    %85 = arith.addf %82, %84 : vector<8x256xf32>
    %cst_36 = arith.constant dense<0xFF800000> : vector<8xf32>
    %86 = vector.multi_reduction <maximumf>, %85, %cst_36 [1] : vector<8x256xf32> to vector<8xf32>
    %87 = vector.shape_cast %86 : vector<8xf32> to vector<8x1xf32>
    %88 = vector.broadcast %87 : vector<8x1xf32> to vector<8x256xf32>
    %89 = arith.subf %85, %88 : vector<8x256xf32>
    %90 = math.exp %89 : vector<8x256xf32>
    %cst_37 = arith.constant dense<0.000000e+00> : vector<8xf32>
    %91 = vector.multi_reduction <add>, %90, %cst_37 [1] : vector<8x256xf32> to vector<8xf32>
    %92 = vector.shape_cast %91 : vector<8xf32> to vector<8x1xf32>
    %93 = math.log %92 : vector<8x1xf32>
    %94 = arith.addf %93, %87 : vector<8x1xf32>
    %95 = vector.broadcast %94 : vector<8x1xf32> to vector<8x256xf32>
    %96 = arith.subf %85, %95 : vector<8x256xf32>
    %c0_38 = arith.constant 0 : index
    %c0_39 = arith.constant 0 : index
    %c0_40 = arith.constant 0 : index
    %97 = vector.load %arg12[%c0_38, %c0_39, %c0_40] : memref<1x8x256xf32, #tpu.memory_space<vmem>>, vector<1x8x256xf32>
    %98 = vector.shape_cast %97 : vector<1x8x256xf32> to vector<8x256xf32>
    %99 = vector.shape_cast %96 : vector<8x256xf32> to vector<1x8x256xf32>
    tpu.vector_store %arg12[%c0_38, %c0_39, %c0_40], %99 {strides = array<i32>} : memref<1x8x256xf32, #tpu.memory_space<vmem>>, vector<1x8x256xf32>,
    %100 = tpu.concatenate %79, %50 in 1 : vector<8x128xf32>, vector<8x128xf32> -> vector<8x256xf32>
    %c0_41 = arith.constant 0 : index
    %c0_42 = arith.constant 0 : index
    %c0_43 = arith.constant 0 : index
    %101 = vector.load %arg13[%c0_41, %c0_42, %c0_43] : memref<1x8x256xf32, #tpu.memory_space<vmem>>, vector<1x8x256xf32>
    %102 = vector.shape_cast %101 : vector<1x8x256xf32> to vector<8x256xf32>
    %103 = vector.shape_cast %100 : vector<8x256xf32> to vector<1x8x256xf32>
    tpu.vector_store %arg13[%c0_41, %c0_42, %c0_43], %103 {strides = array<i32>} : memref<1x8x256xf32, #tpu.memory_space<vmem>>, vector<1x8x256xf32>,
    %c0_44 = arith.constant 0 : index
    %c0_45 = arith.constant 0 : index
    %104 = vector.load %arg14[%c0_44, %c0_45] : memref<8x128xf32, #tpu.memory_space<vmem>>, vector<8x128xf32>
    tpu.vector_store %arg14[%c0_44, %c0_45], %79 {strides = array<i32>} : memref<8x128xf32, #tpu.memory_space<vmem>>, vector<8x128xf32>,
    %c0_46 = arith.constant 0 : index
    %c0_47 = arith.constant 0 : index
    %105 = vector.load %arg15[%c0_46, %c0_47] : memref<8x128xf32, #tpu.memory_space<vmem>>, vector<8x128xf32>
    tpu.vector_store %arg15[%c0_46, %c0_47], %50 {strides = array<i32>} : memref<8x128xf32, #tpu.memory_space<vmem>>, vector<8x128xf32>,
    return
  }
  func.func @transform_0(%arg0: i32) -> (i32, i32, i32) {
    %c0_i32 = arith.constant 0 : i32
    %c0_i32_0 = arith.constant 0 : i32
    %c0_i32_1 = arith.constant 0 : i32
    return %arg0, %c0_i32, %c0_i32_0 : i32, i32, i32
  }
  func.func @transform_1(%arg0: i32) -> (i32, i32, i32) {
    %c0_i32 = arith.constant 0 : i32
    %c0_i32_0 = arith.constant 0 : i32
    %c0_i32_1 = arith.constant 0 : i32
    %c0_i32_2 = arith.constant 0 : i32
    return %c0_i32, %c0_i32_0, %c0_i32_1 : i32, i32, i32
  }
  func.func @transform_2(%arg0: i32) -> (i32, i32) {
    %c0_i32 = arith.constant 0 : i32
    %c0_i32_0 = arith.constant 0 : i32
    %c0_i32_1 = arith.constant 0 : i32
    return %c0_i32, %c0_i32_0 : i32, i32
  }
  func.func @transform_3(%arg0: i32) -> (i32, i32) {
    %c0_i32 = arith.constant 0 : i32
    %c0_i32_0 = arith.constant 0 : i32
    %c0_i32_1 = arith.constant 0 : i32
    return %c0_i32, %c0_i32_0 : i32, i32
  }
  func.func @transform_4(%arg0: i32) -> (i32, i32, i32) {
    %c0_i32 = arith.constant 0 : i32
    %c0_i32_0 = arith.constant 0 : i32
    %c0_i32_1 = arith.constant 0 : i32
    %c0_i32_2 = arith.constant 0 : i32
    return %c0_i32, %c0_i32_0, %c0_i32_1 : i32, i32, i32
  }
  func.func @transform_5(%arg0: i32) -> (i32, i32) {
    %c0_i32 = arith.constant 0 : i32
    %c0_i32_0 = arith.constant 0 : i32
    %c0_i32_1 = arith.constant 0 : i32
    return %c0_i32, %c0_i32_0 : i32, i32
  }
  func.func @transform_6(%arg0: i32) -> (i32, i32) {
    %c0_i32 = arith.constant 0 : i32
    %c0_i32_0 = arith.constant 0 : i32
    %c0_i32_1 = arith.constant 0 : i32
    return %c0_i32, %c0_i32_0 : i32, i32
  }
  func.func @transform_7(%arg0: i32) -> (i32, i32) {
    %c0_i32 = arith.constant 0 : i32
    %c0_i32_0 = arith.constant 0 : i32
    %c0_i32_1 = arith.constant 0 : i32
    return %c0_i32, %c0_i32_0 : i32, i32
  }
  func.func @transform_8(%arg0: i32) -> (i32, i32) {
    %c0_i32 = arith.constant 0 : i32
    %c0_i32_0 = arith.constant 0 : i32
    %c0_i32_1 = arith.constant 0 : i32
    return %c0_i32, %c0_i32_0 : i32, i32
  }
  func.func @transform_9(%arg0: i32) -> (i32, i32) {
    %c0_i32 = arith.constant 0 : i32
    %c0_i32_0 = arith.constant 0 : i32
    %c0_i32_1 = arith.constant 0 : i32
    return %c0_i32, %c0_i32_0 : i32, i32
  }
  func.func @transform_10(%arg0: i32) -> (i32, i32) {
    %c0_i32 = arith.constant 0 : i32
    %c0_i32_0 = arith.constant 0 : i32
    %c0_i32_1 = arith.constant 0 : i32
    return %c0_i32, %c0_i32_0 : i32, i32
  }
  func.func @transform_11(%arg0: i32) -> (i32, i32, i32) {
    %c0_i32 = arith.constant 0 : i32
    %c0_i32_0 = arith.constant 0 : i32
    %c0_i32_1 = arith.constant 0 : i32
    return %arg0, %c0_i32, %c0_i32_0 : i32, i32, i32
  }
  func.func @transform_12(%arg0: i32) -> (i32, i32, i32) {
    %c0_i32 = arith.constant 0 : i32
    %c0_i32_0 = arith.constant 0 : i32
    %c0_i32_1 = arith.constant 0 : i32
    return %arg0, %c0_i32, %c0_i32_0 : i32, i32, i32
  }
}

</mosaic_0001>

<llo_original>
// kernel: attention_decoder_lstm_fused.1
$region0: #{attention_decoder_lstm_fused.1}
  #allocation0 [shape = 'u32[]', space=smem, size = 0x4, offset = 0x4, fixed_abs, tag = 'smem constant byte address 0x4 - core index']
  #allocation1 [shape = 'u32[72,128]{1,0:T(1,128)}', space=vmem, size = 0x9000, scoped, tag = 'internal scratch']
  #allocation2 [shape = 'f32[8,128]{1,0:T(8,128)}', space=vmem, size = 0x1000, scoped, tag = 'scratch operand']
  #allocation3 [shape = 'f32[8,128]{1,0:T(8,128)}', space=vmem, size = 0x1000, scoped, tag = 'scratch operand']
  %s0 = inlined_call_operand.vmem [shape: f32[4,8,256], index: 0, kind: input, shape index: {}]
  %s1 = inlined_call_operand.vmem [shape: f32[8,16,1], index: 1, kind: input, shape index: {}]
  %s2 = inlined_call_operand.vmem [shape: f32[8,128], index: 2, kind: input, shape index: {}]
  %s3 = inlined_call_operand.vmem [shape: f32[8,128], index: 3, kind: input, shape index: {}]
  %s4 = inlined_call_operand.vmem [shape: f32[8,16,128], index: 4, kind: input, shape index: {}]
  %s5 = inlined_call_operand.vmem [shape: bf16[256,512], index: 5, kind: input, shape index: {}]
  %s6 = inlined_call_operand.vmem [shape: f32[1,512], index: 6, kind: input, shape index: {}]
  %s7 = inlined_call_operand.vmem [shape: bf16[256,128], index: 7, kind: input, shape index: {}]
  %s8 = inlined_call_operand.vmem [shape: f32[1,128], index: 8, kind: input, shape index: {}]
  %s9 = inlined_call_operand.vmem [shape: bf16[128,256], index: 9, kind: input, shape index: {}]
  %s10 = inlined_call_operand.vmem [shape: f32[1,256], index: 10, kind: input, shape index: {}]
  %s11 = inlined_call_operand.hbm [shape: f32[4,8,256], index: 11, kind: output, shape index: {0}]
  %s12 = inlined_call_operand.vmem [shape: f32[4,8,256], index: 12, kind: output, shape index: {1}]
  %13 = xla_tuple %s11, %s12
  %s14 = sld [smem:[#allocation0]]
  $region89: #{attention_decoder_lstm_fused.1} parent=0
    _
  %s16 = ssub.s32 1, %s14
  %s17 = scalar_select 0, %s16, %s14
  $region1: #{attention_decoder_lstm_fused.1} parent=0
    #allocation4 [shape = 'u8[16384]{0}', space=vmem, size = 0x4000, scoped, tag = 'output window, operand 0']
    #allocation5 [shape = 's32[2]{0}', space=sflag, size = 0x8, scoped, tag = 'scoped memory for attention_decoder_lstm_fused.1']
    %18 = vsyncpa [#allocation5], 0
    %s19 = scalar_lea.sflag [#allocation5], 1
    %20 = vsyncpa %s19, 0
    loop: start=0, step=1, limit=6
    $region2: #{attention_decoder_lstm_fused.1} parent=1 // loop_pre_header
      _
    $region3: #{attention_decoder_lstm_fused.1} parent=1 // loop_header
      %s22 = sphi 0, %s26
      %p23 = scmp.ge.s32.totalorder %s22, 6
      %s32 = sphi 0, %s34
      %s35 = sphi 0, %s32
      %s36 = sphi 0, %s35
      %s52 = sphi 0, %s36
      %s56 = sphi 0, %s56
      %s58 = sphi 0, %s56
      %s59 = sphi 0, %s58
      %s73 = sphi 0, %s59
      %s77 = sphi 0, %s77
      %s79 = sphi 0, %s77
      %s80 = sphi 0, %s79
      %s94 = sphi 0, %s80
      %s98 = sphi 0, %s98
      %s100 = sphi 0, %s98
      %s101 = sphi 0, %s100
      %s115 = sphi 0, %s101
      %s119 = sphi 0, %s119
      %s121 = sphi 0, %s119
      %s122 = sphi 0, %s121
      %s136 = sphi 0, %s122
      %s140 = sphi 0, %s140
      %s142 = sphi 0, %s140
      %s143 = sphi 0, %s142
      %s157 = sphi 0, %s143
      %s161 = sphi 0, %s161
      %s163 = sphi 0, %s161
      %s164 = sphi 0, %s163
      %s178 = sphi 0, %s164
      %s182 = sphi 0, %s182
      %s184 = sphi 0, %s182
      %s185 = sphi 0, %s184
      %s199 = sphi 0, %s185
      %s203 = sphi 0, %s203
      %s205 = sphi 0, %s203
      %s206 = sphi 0, %s205
      %s220 = sphi 0, %s206
      %s224 = sphi 0, %s224
      %s226 = sphi 0, %s224
      %s227 = sphi 0, %s226
      %s241 = sphi 0, %s227
      %s245 = sphi 0, %s245
      %s247 = sphi 0, %s245
      %s248 = sphi 0, %s247
      %s262 = sphi 0, %s248
      %s268 = sphi 0, %s270
      %s271 = sphi 0, %s268
      %s272 = sphi 0, %s271
      %s288 = sphi 0, %s272
      %s294 = sphi 0, %s296
      %s297 = sphi 0, %s294
      %s298 = sphi 0, %s297
      %s314 = sphi 0, %s298
    $region4: #{attention_decoder_lstm_fused.1} parent=1 // loop_header_branch
      %25 = sbr.rel (%p23) target = $region8
    $region5: #{attention_decoder_lstm_fused.1} parent=1 // loop_body
      %s27 = ssub.s32 %s22, 1
      %s28 = ssub.s32 %s22, 2
      %s29 = sadd.s32 %s22, 1
      %s30 = ssub.s32 %s22, %s29
      %p31 = scmp.eq.s32.totalorder %s30, 0
      %s33 = sadd.s32 %s32, 1
      %s34 = scalar_select %p31, %s32, %s33
      %p37 = pneg %p31
      %p38 = scmp.eq.s32.totalorder %s22, 3
      %p39 = por %p37, %p38
      %p40 = scmp.ne.s32.totalorder %s32, %s35
      %p41 = scmp.eq.s32.totalorder %s22, 0
      %p42 = por %p40, %p41
      %p43 = scmp.ne.s32.totalorder %s32, %s35
      %p44 = scmp.eq.s32.totalorder %s27, 3
      %p45 = por %p43, %p44
      %p46 = scmp.ne.s32.totalorder %s35, %s36
      %p47 = scmp.eq.s32.totalorder %s27, 0
      %p48 = por %p46, %p47
      %p49 = scmp.ne.s32.totalorder %s35, %s36
      %p50 = scmp.eq.s32.totalorder %s28, 3
      %p51 = por %p49, %p50
      %p53 = scmp.ne.s32.totalorder %s36, %s52
      %p54 = scmp.eq.s32.totalorder %s28, 0
      %p55 = por %p53, %p54
      %s57 = sadd.s32 %s56, 1
      %p60 = scmp.eq.s32.totalorder %s22, 3
      %p61 = scmp.ne.s32.totalorder %s56, %s58
      %p62 = scmp.eq.s32.totalorder %s22, 0
      %p63 = por %p61, %p62
      %p64 = scmp.ne.s32.totalorder %s56, %s58
      %p65 = scmp.eq.s32.totalorder %s27, 3
      %p66 = por %p64, %p65
      %p67 = scmp.ne.s32.totalorder %s58, %s59
      %p68 = scmp.eq.s32.totalorder %s27, 0
      %p69 = por %p67, %p68
      %p70 = scmp.ne.s32.totalorder %s58, %s59
      %p71 = scmp.eq.s32.totalorder %s28, 3
      %p72 = por %p70, %p71
      %p74 = scmp.ne.s32.totalorder %s59, %s73
      %p75 = scmp.eq.s32.totalorder %s28, 0
      %p76 = por %p74, %p75
      %s78 = sadd.s32 %s77, 1
      %p81 = scmp.eq.s32.totalorder %s22, 3
      %p82 = scmp.ne.s32.totalorder %s77, %s79
      %p83 = scmp.eq.s32.totalorder %s22, 0
      %p84 = por %p82, %p83
      %p85 = scmp.ne.s32.totalorder %s77, %s79
      %p86 = scmp.eq.s32.totalorder %s27, 3
      %p87 = por %p85, %p86
      %p88 = scmp.ne.s32.totalorder %s79, %s80
      %p89 = scmp.eq.s32.totalorder %s27, 0
      %p90 = por %p88, %p89
      %p91 = scmp.ne.s32.totalorder %s79, %s80
      %p92 = scmp.eq.s32.totalorder %s28, 3
      %p93 = por %p91, %p92
      %p95 = scmp.ne.s32.totalorder %s80, %s94
      %p96 = scmp.eq.s32.totalorder %s28, 0
      %p97 = por %p95, %p96
      %s99 = sadd.s32 %s98, 1
      %p102 = scmp.eq.s32.totalorder %s22, 3
      %p103 = scmp.ne.s32.totalorder %s98, %s100
      %p104 = scmp.eq.s32.totalorder %s22, 0
      %p105 = por %p103, %p104
      %p106 = scmp.ne.s32.totalorder %s98, %s100
      %p107 = scmp.eq.s32.totalorder %s27, 3
      %p108 = por %p106, %p107
      %p109 = scmp.ne.s32.totalorder %s100, %s101
      %p110 = scmp.eq.s32.totalorder %s27, 0
      %p111 = por %p109, %p110
      %p112 = scmp.ne.s32.totalorder %s100, %s101
      %p113 = scmp.eq.s32.totalorder %s28, 3
      %p114 = por %p112, %p113
      %p116 = scmp.ne.s32.totalorder %s101, %s115
      %p117 = scmp.eq.s32.totalorder %s28, 0
      %p118 = por %p116, %p117
      %s120 = sadd.s32 %s119, 1
      %p123 = scmp.eq.s32.totalorder %s22, 3
      %p124 = scmp.ne.s32.totalorder %s119, %s121
      %p125 = scmp.eq.s32.totalorder %s22, 0
      %p126 = por %p124, %p125
      %p127 = scmp.ne.s32.totalorder %s119, %s121
      %p128 = scmp.eq.s32.totalorder %s27, 3
      %p129 = por %p127, %p128
      %p130 = scmp.ne.s32.totalorder %s121, %s122
      %p131 = scmp.eq.s32.totalorder %s27, 0
      %p132 = por %p130, %p131
      %p133 = scmp.ne.s32.totalorder %s121, %s122
      %p134 = scmp.eq.s32.totalorder %s28, 3
      %p135 = por %p133, %p134
      %p137 = scmp.ne.s32.totalorder %s122, %s136
      %p138 = scmp.eq.s32.totalorder %s28, 0
      %p139 = por %p137, %p138
      %s141 = sadd.s32 %s140, 1
      %p144 = scmp.eq.s32.totalorder %s22, 3
      %p145 = scmp.ne.s32.totalorder %s140, %s142
      %p146 = scmp.eq.s32.totalorder %s22, 0
      %p147 = por %p145, %p146
      %p148 = scmp.ne.s32.totalorder %s140, %s142
      %p149 = scmp.eq.s32.totalorder %s27, 3
      %p150 = por %p148, %p149
      %p151 = scmp.ne.s32.totalorder %s142, %s143
      %p152 = scmp.eq.s32.totalorder %s27, 0
      %p153 = por %p151, %p152
      %p154 = scmp.ne.s32.totalorder %s142, %s143
      %p155 = scmp.eq.s32.totalorder %s28, 3
      %p156 = por %p154, %p155
      %p158 = scmp.ne.s32.totalorder %s143, %s157
      %p159 = scmp.eq.s32.totalorder %s28, 0
      %p160 = por %p158, %p159
      %s162 = sadd.s32 %s161, 1
      %p165 = scmp.eq.s32.totalorder %s22, 3
      %p166 = scmp.ne.s32.totalorder %s161, %s163
      %p167 = scmp.eq.s32.totalorder %s22, 0
      %p168 = por %p166, %p167
      %p169 = scmp.ne.s32.totalorder %s161, %s163
      %p170 = scmp.eq.s32.totalorder %s27, 3
      %p171 = por %p169, %p170
      %p172 = scmp.ne.s32.totalorder %s163, %s164
      %p173 = scmp.eq.s32.totalorder %s27, 0
      %p174 = por %p172, %p173
      %p175 = scmp.ne.s32.totalorder %s163, %s164
      %p176 = scmp.eq.s32.totalorder %s28, 3
      %p177 = por %p175, %p176
      %p179 = scmp.ne.s32.totalorder %s164, %s178
      %p180 = scmp.eq.s32.totalorder %s28, 0
      %p181 = por %p179, %p180
      %s183 = sadd.s32 %s182, 1
      %p186 = scmp.eq.s32.totalorder %s22, 3
      %p187 = scmp.ne.s32.totalorder %s182, %s184
      %p188 = scmp.eq.s32.totalorder %s22, 0
      %p189 = por %p187, %p188
      %p190 = scmp.ne.s32.totalorder %s182, %s184
      %p191 = scmp.eq.s32.totalorder %s27, 3
      %p192 = por %p190, %p191
      %p193 = scmp.ne.s32.totalorder %s184, %s185
      %p194 = scmp.eq.s32.totalorder %s27, 0
      %p195 = por %p193, %p194
      %p196 = scmp.ne.s32.totalorder %s184, %s185
      %p197 = scmp.eq.s32.totalorder %s28, 3
      %p198 = por %p196, %p197
      %p200 = scmp.ne.s32.totalorder %s185, %s199
      %p201 = scmp.eq.s32.totalorder %s28, 0
      %p202 = por %p200, %p201
      %s204 = sadd.s32 %s203, 1
      %p207 = scmp.eq.s32.totalorder %s22, 3
      %p208 = scmp.ne.s32.totalorder %s203, %s205
      %p209 = scmp.eq.s32.totalorder %s22, 0
      %p210 = por %p208, %p209
      %p211 = scmp.ne.s32.totalorder %s203, %s205
      %p212 = scmp.eq.s32.totalorder %s27, 3
      %p213 = por %p211, %p212
      %p214 = scmp.ne.s32.totalorder %s205, %s206
      %p215 = scmp.eq.s32.totalorder %s27, 0
      %p216 = por %p214, %p215
      %p217 = scmp.ne.s32.totalorder %s205, %s206
      %p218 = scmp.eq.s32.totalorder %s28, 3
      %p219 = por %p217, %p218
      %p221 = scmp.ne.s32.totalorder %s206, %s220
      %p222 = scmp.eq.s32.totalorder %s28, 0
      %p223 = por %p221, %p222
      %s225 = sadd.s32 %s224, 1
      %p228 = scmp.eq.s32.totalorder %s22, 3
      %p229 = scmp.ne.s32.totalorder %s224, %s226
      %p230 = scmp.eq.s32.totalorder %s22, 0
      %p231 = por %p229, %p230
      %p232 = scmp.ne.s32.totalorder %s224, %s226
      %p233 = scmp.eq.s32.totalorder %s27, 3
      %p234 = por %p232, %p233
      %p235 = scmp.ne.s32.totalorder %s226, %s227
      %p236 = scmp.eq.s32.totalorder %s27, 0
      %p237 = por %p235, %p236
      %p238 = scmp.ne.s32.totalorder %s226, %s227
      %p239 = scmp.eq.s32.totalorder %s28, 3
      %p240 = por %p238, %p239
      %p242 = scmp.ne.s32.totalorder %s227, %s241
      %p243 = scmp.eq.s32.totalorder %s28, 0
      %p244 = por %p242, %p243
      %s246 = sadd.s32 %s245, 1
      %p249 = scmp.eq.s32.totalorder %s22, 3
      %p250 = scmp.ne.s32.totalorder %s245, %s247
      %p251 = scmp.eq.s32.totalorder %s22, 0
      %p252 = por %p250, %p251
      %p253 = scmp.ne.s32.totalorder %s245, %s247
      %p254 = scmp.eq.s32.totalorder %s27, 3
      %p255 = por %p253, %p254
      %p256 = scmp.ne.s32.totalorder %s247, %s248
      %p257 = scmp.eq.s32.totalorder %s27, 0
      %p258 = por %p256, %p257
      %p259 = scmp.ne.s32.totalorder %s247, %s248
      %p260 = scmp.eq.s32.totalorder %s28, 3
      %p261 = por %p259, %p260
      %p263 = scmp.ne.s32.totalorder %s248, %s262
      %p264 = scmp.eq.s32.totalorder %s28, 0
      %p265 = por %p263, %p264
      %s266 = ssub.s32 %s22, %s29
      %p267 = scmp.eq.s32.totalorder %s266, 0
      %s269 = sadd.s32 %s268, 1
      %s270 = scalar_select %p267, %s268, %s269
      %p273 = pneg %p267
      %p274 = scmp.eq.s32.totalorder %s22, 3
      %p275 = por %p273, %p274
      %p276 = scmp.ne.s32.totalorder %s268, %s271
      %p277 = scmp.eq.s32.totalorder %s22, 0
      %p278 = por %p276, %p277
      %p279 = scmp.ne.s32.totalorder %s268, %s271
      %p280 = scmp.eq.s32.totalorder %s27, 3
      %p281 = por %p279, %p280
      %p282 = scmp.ne.s32.totalorder %s271, %s272
      %p283 = scmp.eq.s32.totalorder %s27, 0
      %p284 = por %p282, %p283
      %p285 = scmp.ne.s32.totalorder %s271, %s272
      %p286 = scmp.eq.s32.totalorder %s28, 3
      %p287 = por %p285, %p286
      %p289 = scmp.ne.s32.totalorder %s272, %s288
      %p290 = scmp.eq.s32.totalorder %s28, 0
      %p291 = por %p289, %p290
      %s292 = ssub.s32 %s22, %s29
      %p293 = scmp.eq.s32.totalorder %s292, 0
      %s295 = sadd.s32 %s294, 1
      %s296 = scalar_select %p293, %s294, %s295
      %p299 = pneg %p293
      %p300 = scmp.eq.s32.totalorder %s22, 3
      %p301 = por %p299, %p300
      %p302 = scmp.ne.s32.totalorder %s294, %s297
      %p303 = scmp.eq.s32.totalorder %s22, 0
      %p304 = por %p302, %p303
      %p305 = scmp.ne.s32.totalorder %s294, %s297
      %p306 = scmp.eq.s32.totalorder %s27, 3
      %p307 = por %p305, %p306
      %p308 = scmp.ne.s32.totalorder %s297, %s298
      %p309 = scmp.eq.s32.totalorder %s27, 0
      %p310 = por %p308, %p309
      %p311 = scmp.ne.s32.totalorder %s297, %s298
      %p312 = scmp.eq.s32.totalorder %s28, 3
      %p313 = por %p311, %p312
      %p315 = scmp.ne.s32.totalorder %s298, %s314
      %p316 = scmp.eq.s32.totalorder %s28, 0
      %p317 = por %p315, %p316
      %p318 = scmp.le.s32.totalorder 1, %s22
      %p319 = scmp.lt.s32.totalorder %s22, 5
      %p320 = pnand %p318, %p319
      %p321 = pneg %p320
      // Predicated region
      $region9: #{attention_decoder_lstm_fused.1} parent=5 // pred_check
        _
      $region10: #{attention_decoder_lstm_fused.1} parent=5 // pred_check_branch
        %323 = sbr.rel (%p320) target = $region12
      $region11: #{attention_decoder_lstm_fused.1} parent=5 // pred_region
        %s324 = ssub.s32 %s22, 1
        // Predicated region
        $region13: #{attention_decoder_lstm_fused.1} parent=11 // pred_check
          %p325 = pneg %p69
        $region14: #{attention_decoder_lstm_fused.1} parent=11 // pred_check_branch
          %327 = sbr.rel (%p325) target = $region16
        $region15: #{attention_decoder_lstm_fused.1} parent=11 // pred_region
          _
        $region16: #{attention_decoder_lstm_fused.1} parent=11 // pred_fallthru
          _
        // Predicated region
        $region17: #{attention_decoder_lstm_fused.1} parent=11 // pred_check
          %p328 = pneg %p90
        $region18: #{attention_decoder_lstm_fused.1} parent=11 // pred_check_branch
          %330 = sbr.rel (%p328) target = $region20
        $region19: #{attention_decoder_lstm_fused.1} parent=11 // pred_region
          _
        $region20: #{attention_decoder_lstm_fused.1} parent=11 // pred_fallthru
          _
        // Predicated region
        $region21: #{attention_decoder_lstm_fused.1} parent=11 // pred_check
          %p331 = pneg %p111
        $region22: #{attention_decoder_lstm_fused.1} parent=11 // pred_check_branch
          %333 = sbr.rel (%p331) target = $region24
        $region23: #{attention_decoder_lstm_fused.1} parent=11 // pred_region
          _
        $region24: #{attention_decoder_lstm_fused.1} parent=11 // pred_fallthru
          _
        // Predicated region
        $region25: #{attention_decoder_lstm_fused.1} parent=11 // pred_check
          %p334 = pneg %p132
        $region26: #{attention_decoder_lstm_fused.1} parent=11 // pred_check_branch
          %336 = sbr.rel (%p334) target = $region28
        $region27: #{attention_decoder_lstm_fused.1} parent=11 // pred_region
          _
        $region28: #{attention_decoder_lstm_fused.1} parent=11 // pred_fallthru
          _
        // Predicated region
        $region29: #{attention_decoder_lstm_fused.1} parent=11 // pred_check
          %p337 = pneg %p153
        $region30: #{attention_decoder_lstm_fused.1} parent=11 // pred_check_branch
          %339 = sbr.rel (%p337) target = $region32
        $region31: #{attention_decoder_lstm_fused.1} parent=11 // pred_region
          _
        $region32: #{attention_decoder_lstm_fused.1} parent=11 // pred_fallthru
          _
        // Predicated region
        $region33: #{attention_decoder_lstm_fused.1} parent=11 // pred_check
          %p340 = pneg %p174
        $region34: #{attention_decoder_lstm_fused.1} parent=11 // pred_check_branch
          %342 = sbr.rel (%p340) target = $region36
        $region35: #{attention_decoder_lstm_fused.1} parent=11 // pred_region
          _
        $region36: #{attention_decoder_lstm_fused.1} parent=11 // pred_fallthru
          _
        // Predicated region
        $region37: #{attention_decoder_lstm_fused.1} parent=11 // pred_check
          %p343 = pneg %p195
        $region38: #{attention_decoder_lstm_fused.1} parent=11 // pred_check_branch
          %345 = sbr.rel (%p343) target = $region40
        $region39: #{attention_decoder_lstm_fused.1} parent=11 // pred_region
          _
        $region40: #{attention_decoder_lstm_fused.1} parent=11 // pred_fallthru
          _
        // Predicated region
        $region41: #{attention_decoder_lstm_fused.1} parent=11 // pred_check
          %p346 = pneg %p216
        $region42: #{attention_decoder_lstm_fused.1} parent=11 // pred_check_branch
          %348 = sbr.rel (%p346) target = $region44
        $region43: #{attention_decoder_lstm_fused.1} parent=11 // pred_region
          _
        $region44: #{attention_decoder_lstm_fused.1} parent=11 // pred_fallthru
          _
        // Predicated region
        $region45: #{attention_decoder_lstm_fused.1} parent=11 // pred_check
          %p349 = pneg %p237
        $region46: #{attention_decoder_lstm_fused.1} parent=11 // pred_check_branch
          %351 = sbr.rel (%p349) target = $region48
        $region47: #{attention_decoder_lstm_fused.1} parent=11 // pred_region
          _
        $region48: #{attention_decoder_lstm_fused.1} parent=11 // pred_fallthru
          _
        // Predicated region
        $region49: #{attention_decoder_lstm_fused.1} parent=11 // pred_check
          %p352 = pneg %p258
        $region50: #{attention_decoder_lstm_fused.1} parent=11 // pred_check_branch
          %354 = sbr.rel (%p352) target = $region52
        $region51: #{attention_decoder_lstm_fused.1} parent=11 // pred_region
          _
        $region52: #{attention_decoder_lstm_fused.1} parent=11 // pred_fallthru
          _
      $region12: #{attention_decoder_lstm_fused.1} parent=5 // pred_fallthru
        _
      %p355 = scmp.lt.s32.totalorder %s22, 4
      // Predicated region
      $region53: #{attention_decoder_lstm_fused.1} parent=5 // pred_check
        %p356 = pneg %p355
      $region54: #{attention_decoder_lstm_fused.1} parent=5 // pred_check_branch
        %358 = sbr.rel (%p356) target = $region56
      $region55: #{attention_decoder_lstm_fused.1} parent=5 // pred_region
        // Predicated region
        $region57: #{attention_decoder_lstm_fused.1} parent=55 // pred_check
          %p359 = pneg %p42
        $region58: #{attention_decoder_lstm_fused.1} parent=55 // pred_check_branch
          %361 = sbr.rel (%p359) target = $region60
        $region59: #{attention_decoder_lstm_fused.1} parent=55 // pred_region
          %p362 = scmp.lt.s32.totalorder %s22, 3
          %s363 = scalar_select %p362, %s22, 3
          %s364 = smul.addr %s363, 2
          %s365 = smul.addr %s364, 8
          %s366 = scalar_lea.vmem %s0, %s365
        $region60: #{attention_decoder_lstm_fused.1} parent=55 // pred_fallthru
          _
      $region56: #{attention_decoder_lstm_fused.1} parent=5 // pred_fallthru
        _
      %p367 = scmp.le.s32.totalorder 1, %s22
      %p368 = scmp.lt.s32.totalorder %s22, 5
      %p369 = pnand %p367, %p368
      %p370 = pneg %p369
      // Predicated region
      $region61: #{attention_decoder_lstm_fused.1} parent=5 // pred_check
        _
      $region62: #{attention_decoder_lstm_fused.1} parent=5 // pred_check_branch
        %372 = sbr.rel (%p369) target = $region64
      $region63: #{attention_decoder_lstm_fused.1} parent=5 // pred_region
        %s373 = ssub.s32 %s22, 1
        %p374 = scmp.lt.s32.totalorder %s27, 3
        %s375 = scalar_select %p374, %s27, 3
        %s376 = smul.addr %s375, 2
        %s377 = smul.addr %s376, 8
        %s378 = scalar_lea.vmem %s0, %s377
        %p379 = pneg %p48
        %p380 = pneg %p45
        %p381 = pneg %p69
        %p382 = pneg %p66
        %p383 = pneg %p90
        %p384 = pneg %p87
        %p385 = pneg %p111
        %p386 = pneg %p108
        %p387 = pneg %p132
        %p388 = pneg %p129
        %p389 = pneg %p153
        %p390 = pneg %p150
        %p391 = pneg %p174
        %p392 = pneg %p171
        %p393 = pneg %p195
        %p394 = pneg %p192
        %p395 = pneg %p216
        %p396 = pneg %p213
        %p397 = pneg %p237
        %p398 = pneg %p234
        %p399 = pneg %p258
        %p400 = pneg %p255
        %p401 = pneg %p284
        %p402 = pneg %p281
        %s403 = sand.u32 %s271, 1
        %s404 = scalar_lea.sflag [#allocation5], %s403
        %s405 = sand.u32 %s271, 1
        %s406 = smul.addr %s405, 16
        %s407 = scalar_lea.vmem [#allocation4], %s406
        %p408 = pneg %p310
        %p409 = pneg %p307
        %p410 = scmp.lt.s32.totalorder %s27, 3
        %s411 = scalar_select %p410, %s27, 3
        %s412 = smul.addr %s411, 2
        %s413 = smul.addr %s412, 8
        %s414 = scalar_lea.vmem %s12, %s413
        %p415 = scmp.lt.s32.totalorder %s27, 3
        %s416 = scalar_select %p415, %s27, 3
        %s417 = smul.addr %s416, 2
        %s418 = smul.addr %s417, 8
        %s419 = scalar_lea.vmem %s0, %s418
        %p420 = scmp.lt.s32.totalorder %s27, 3
        %s421 = scalar_select %p420, %s27, 3
        %s422 = smul.addr %s421, 2
        %s423 = smul.addr %s422, 8
        %s424 = scalar_lea.vmem %s12, %s423
        %p425 = scmp.eq.s32.totalorder %s27, 0
        // Predicated region
        $region65: #{attention_decoder_lstm_fused.1} parent=63 // pred_check
          %p426 = pneg %p425
        $region66: #{attention_decoder_lstm_fused.1} parent=63 // pred_check_branch
          %428 = sbr.rel (%p426) target = $region68
        $region67: #{attention_decoder_lstm_fused.1} parent=63 // pred_region
          %v429 = vld [vmem:[%s2] sm:$0xff]
          %430 = vst [vmem:[#allocation2] sm:$0xff] %v429
          %v431 = vld [vmem:[%s3] sm:$0xff]
          %432 = vst [vmem:[#allocation3] sm:$0xff] %v431
        $region68: #{attention_decoder_lstm_fused.1} parent=63 // pred_fallthru
          _
        %v433 = vld [vmem:[#allocation2] sm:$0xff]
        %v434 = vld [vmem:[#allocation3] sm:$0xff]
        %v435 = vld [vmem:[%s419] sm:$0xff]
        %v436 = vld [vmem:[%s419 + $0x8] sm:$0xff]
        %v437 = vpack.c.bf16 %v435, %v435
        %v438 = vpack.c.bf16 %v433, %v433
        %v439 = vld [vmem:[%s5] sm:$0xff]
        %v440 = vld [vmem:[%s5 + $0x8] sm:$0xff]
        %v441 = vld [vmem:[%s5 + $0x10] sm:$0xff]
        %v442 = vld [vmem:[%s5 + $0x18] sm:$0xff]
        %v443 = vld [vmem:[%s5 + $0x20] sm:$0xff]
        %v444 = vld [vmem:[%s5 + $0x28] sm:$0xff]
        %v445 = vld [vmem:[%s5 + $0x30] sm:$0xff]
        %v446 = vld [vmem:[%s5 + $0x38] sm:$0xff]
        %v447 = vld [vmem:[%s5 + $0x40] sm:$0xff]
        %v448 = vld [vmem:[%s5 + $0x48] sm:$0xff]
        %v449 = vld [vmem:[%s5 + $0x50] sm:$0xff]
        %v450 = vld [vmem:[%s5 + $0x58] sm:$0xff]
        %v451 = vld [vmem:[%s5 + $0x60] sm:$0xff]
        %v452 = vld [vmem:[%s5 + $0x68] sm:$0xff]
        %v453 = vld [vmem:[%s5 + $0x70] sm:$0xff]
        %v454 = vld [vmem:[%s5 + $0x78] sm:$0xff]
        %v455 = vld [vmem:[%s5 + $0x80] sm:$0xff]
        %v456 = vld [vmem:[%s5 + $0x88] sm:$0xff]
        %v457 = vld [vmem:[%s5 + $0x90] sm:$0xff]
        %v458 = vld [vmem:[%s5 + $0x98] sm:$0xff]
        %v459 = vld [vmem:[%s5 + $0xa0] sm:$0xff]
        %v460 = vld [vmem:[%s5 + $0xa8] sm:$0xff]
        %v461 = vld [vmem:[%s5 + $0xb0] sm:$0xff]
        %v462 = vld [vmem:[%s5 + $0xb8] sm:$0xff]
        %v463 = vld [vmem:[%s5 + $0xc0] sm:$0xff]
        %v464 = vld [vmem:[%s5 + $0xc8] sm:$0xff]
        %v465 = vld [vmem:[%s5 + $0xd0] sm:$0xff]
        %v466 = vld [vmem:[%s5 + $0xd8] sm:$0xff]
        %v467 = vld [vmem:[%s5 + $0xe0] sm:$0xff]
        %v468 = vld [vmem:[%s5 + $0xe8] sm:$0xff]
        %v469 = vld [vmem:[%s5 + $0xf0] sm:$0xff]
        %v470 = vld [vmem:[%s5 + $0xf8] sm:$0xff]
        %v471 = vld [vmem:[%s5 + $0x100] sm:$0xff]
        %v472 = vld [vmem:[%s5 + $0x108] sm:$0xff]
        %v473 = vld [vmem:[%s5 + $0x110] sm:$0xff]
        %v474 = vld [vmem:[%s5 + $0x118] sm:$0xff]
        %v475 = vld [vmem:[%s5 + $0x120] sm:$0xff]
        %v476 = vld [vmem:[%s5 + $0x128] sm:$0xff]
        %v477 = vld [vmem:[%s5 + $0x130] sm:$0xff]
        %v478 = vld [vmem:[%s5 + $0x138] sm:$0xff]
        %v479 = vld [vmem:[%s5 + $0x140] sm:$0xff]
        %v480 = vld [vmem:[%s5 + $0x148] sm:$0xff]
        %v481 = vld [vmem:[%s5 + $0x150] sm:$0xff]
        %v482 = vld [vmem:[%s5 + $0x158] sm:$0xff]
        %v483 = vld [vmem:[%s5 + $0x160] sm:$0xff]
        %v484 = vld [vmem:[%s5 + $0x168] sm:$0xff]
        %v485 = vld [vmem:[%s5 + $0x170] sm:$0xff]
        %v486 = vld [vmem:[%s5 + $0x178] sm:$0xff]
        %v487 = vld [vmem:[%s5 + $0x180] sm:$0xff]
        %v488 = vld [vmem:[%s5 + $0x188] sm:$0xff]
        %v489 = vld [vmem:[%s5 + $0x190] sm:$0xff]
        %v490 = vld [vmem:[%s5 + $0x198] sm:$0xff]
        %v491 = vld [vmem:[%s5 + $0x1a0] sm:$0xff]
        %v492 = vld [vmem:[%s5 + $0x1a8] sm:$0xff]
        %v493 = vld [vmem:[%s5 + $0x1b0] sm:$0xff]
        %v494 = vld [vmem:[%s5 + $0x1b8] sm:$0xff]
        %v495 = vld [vmem:[%s5 + $0x1c0] sm:$0xff]
        %v496 = vld [vmem:[%s5 + $0x1c8] sm:$0xff]
        %v497 = vld [vmem:[%s5 + $0x1d0] sm:$0xff]
        %v498 = vld [vmem:[%s5 + $0x1d8] sm:$0xff]
        %v499 = vld [vmem:[%s5 + $0x1e0] sm:$0xff]
        %v500 = vld [vmem:[%s5 + $0x1e8] sm:$0xff]
        %v501 = vld [vmem:[%s5 + $0x1f0] sm:$0xff]
        %v502 = vld [vmem:[%s5 + $0x1f8] sm:$0xff]
        %v503 = vld [vmem:[%s6] sm:$0xf]
        %v505 = vperm.slane %v503, 0
        %v506 = vperm.slane %v503, 1
        %v507 = vperm.slane %v503, 2
        %v508 = vperm.slane %v503, 3
        %v577 = vunpack.c.l.b16 %v439
        %v578 = vunpack.c.h.b16 %v439
        %v579 = vunpack.c.l.b16 %v440
        %v580 = vunpack.c.h.b16 %v440
        %v581 = vunpack.c.l.b16 %v441
        %v582 = vunpack.c.h.b16 %v441
        %v583 = vunpack.c.l.b16 %v442
        %v584 = vunpack.c.h.b16 %v442
        %v585 = vunpack.c.l.b16 %v443
        %v586 = vunpack.c.h.b16 %v443
        %v587 = vunpack.c.l.b16 %v444
        %v588 = vunpack.c.h.b16 %v444
        %v589 = vunpack.c.l.b16 %v445
        %v590 = vunpack.c.h.b16 %v445
        %v591 = vunpack.c.l.b16 %v446
        %v592 = vunpack.c.h.b16 %v446
        %v593 = vunpack.c.l.b16 %v447
        %v594 = vunpack.c.h.b16 %v447
        %v595 = vunpack.c.l.b16 %v448
        %v596 = vunpack.c.h.b16 %v448
        %v597 = vunpack.c.l.b16 %v449
        %v598 = vunpack.c.h.b16 %v449
        %v599 = vunpack.c.l.b16 %v450
        %v600 = vunpack.c.h.b16 %v450
        %v601 = vunpack.c.l.b16 %v451
        %v602 = vunpack.c.h.b16 %v451
        %v603 = vunpack.c.l.b16 %v452
        %v604 = vunpack.c.h.b16 %v452
        %v605 = vunpack.c.l.b16 %v453
        %v606 = vunpack.c.h.b16 %v453
        %v607 = vunpack.c.l.b16 %v454
        %v608 = vunpack.c.h.b16 %v454
        %v609 = vunpack.c.l.b16 %v455
        %v610 = vunpack.c.h.b16 %v455
        %v611 = vunpack.c.l.b16 %v456
        %v612 = vunpack.c.h.b16 %v456
        %v613 = vunpack.c.l.b16 %v457
        %v614 = vunpack.c.h.b16 %v457
        %v615 = vunpack.c.l.b16 %v458
        %v616 = vunpack.c.h.b16 %v458
        %v617 = vunpack.c.l.b16 %v459
        %v618 = vunpack.c.h.b16 %v459
        %v619 = vunpack.c.l.b16 %v460
        %v620 = vunpack.c.h.b16 %v460
        %v621 = vunpack.c.l.b16 %v461
        %v622 = vunpack.c.h.b16 %v461
        %v623 = vunpack.c.l.b16 %v462
        %v624 = vunpack.c.h.b16 %v462
        %v625 = vunpack.c.l.b16 %v463
        %v626 = vunpack.c.h.b16 %v463
        %v627 = vunpack.c.l.b16 %v464
        %v628 = vunpack.c.h.b16 %v464
        %v629 = vunpack.c.l.b16 %v465
        %v630 = vunpack.c.h.b16 %v465
        %v631 = vunpack.c.l.b16 %v466
        %v632 = vunpack.c.h.b16 %v466
        %v633 = vunpack.c.l.b16 %v467
        %v634 = vunpack.c.h.b16 %v467
        %v635 = vunpack.c.l.b16 %v468
        %v636 = vunpack.c.h.b16 %v468
        %v637 = vunpack.c.l.b16 %v469
        %v638 = vunpack.c.h.b16 %v469
        %v639 = vunpack.c.l.b16 %v470
        %v640 = vunpack.c.h.b16 %v470
        %v641 = vunpack.c.l.b16 %v471
        %v642 = vunpack.c.h.b16 %v471
        %v643 = vunpack.c.l.b16 %v472
        %v644 = vunpack.c.h.b16 %v472
        %v645 = vunpack.c.l.b16 %v473
        %v646 = vunpack.c.h.b16 %v473
        %v647 = vunpack.c.l.b16 %v474
        %v648 = vunpack.c.h.b16 %v474
        %v649 = vunpack.c.l.b16 %v475
        %v650 = vunpack.c.h.b16 %v475
        %v651 = vunpack.c.l.b16 %v476
        %v652 = vunpack.c.h.b16 %v476
        %v653 = vunpack.c.l.b16 %v477
        %v654 = vunpack.c.h.b16 %v477
        %v655 = vunpack.c.l.b16 %v478
        %v656 = vunpack.c.h.b16 %v478
        %v657 = vunpack.c.l.b16 %v479
        %v658 = vunpack.c.h.b16 %v479
        %v659 = vunpack.c.l.b16 %v480
        %v660 = vunpack.c.h.b16 %v480
        %v661 = vunpack.c.l.b16 %v481
        %v662 = vunpack.c.h.b16 %v481
        %v663 = vunpack.c.l.b16 %v482
        %v664 = vunpack.c.h.b16 %v482
        %v665 = vunpack.c.l.b16 %v483
        %v666 = vunpack.c.h.b16 %v483
        %v667 = vunpack.c.l.b16 %v484
        %v668 = vunpack.c.h.b16 %v484
        %v669 = vunpack.c.l.b16 %v485
        %v670 = vunpack.c.h.b16 %v485
        %v671 = vunpack.c.l.b16 %v486
        %v672 = vunpack.c.h.b16 %v486
        %v673 = vunpack.c.l.b16 %v487
        %v674 = vunpack.c.h.b16 %v487
        %v675 = vunpack.c.l.b16 %v488
        %v676 = vunpack.c.h.b16 %v488
        %v677 = vunpack.c.l.b16 %v489
        %v678 = vunpack.c.h.b16 %v489
        %v679 = vunpack.c.l.b16 %v490
        %v680 = vunpack.c.h.b16 %v490
        %v681 = vunpack.c.l.b16 %v491
        %v682 = vunpack.c.h.b16 %v491
        %v683 = vunpack.c.l.b16 %v492
        %v684 = vunpack.c.h.b16 %v492
        %v685 = vunpack.c.l.b16 %v493
        %v686 = vunpack.c.h.b16 %v493
        %v687 = vunpack.c.l.b16 %v494
        %v688 = vunpack.c.h.b16 %v494
        %v689 = vunpack.c.l.b16 %v495
        %v690 = vunpack.c.h.b16 %v495
        %v691 = vunpack.c.l.b16 %v496
        %v692 = vunpack.c.h.b16 %v496
        %v693 = vunpack.c.l.b16 %v497
        %v694 = vunpack.c.h.b16 %v497
        %v695 = vunpack.c.l.b16 %v498
        %v696 = vunpack.c.h.b16 %v498
        %v697 = vunpack.c.l.b16 %v499
        %v698 = vunpack.c.h.b16 %v499
        %v699 = vunpack.c.l.b16 %v500
        %v700 = vunpack.c.h.b16 %v500
        %v701 = vunpack.c.l.b16 %v501
        %v702 = vunpack.c.h.b16 %v501
        %v703 = vunpack.c.l.b16 %v502
        %v704 = vunpack.c.h.b16 %v502
        %v705 = vpack.c.b16 %v581, %v577
        %v706 = vpack.c.b16 %v582, %v578
        %v707 = vpack.c.b16 %v583, %v579
        %v708 = vpack.c.b16 %v584, %v580
        %v709 = vpack.c.b16 %v589, %v585
        %v710 = vpack.c.b16 %v590, %v586
        %v711 = vpack.c.b16 %v591, %v587
        %v712 = vpack.c.b16 %v592, %v588
        %v713 = vpack.c.b16 %v597, %v593
        %v714 = vpack.c.b16 %v598, %v594
        %v715 = vpack.c.b16 %v599, %v595
        %v716 = vpack.c.b16 %v600, %v596
        %v717 = vpack.c.b16 %v605, %v601
        %v718 = vpack.c.b16 %v606, %v602
        %v719 = vpack.c.b16 %v607, %v603
        %v720 = vpack.c.b16 %v608, %v604
        %v721 = vpack.c.b16 %v613, %v609
        %v722 = vpack.c.b16 %v614, %v610
        %v723 = vpack.c.b16 %v615, %v611
        %v724 = vpack.c.b16 %v616, %v612
        %v725 = vpack.c.b16 %v621, %v617
        %v726 = vpack.c.b16 %v622, %v618
        %v727 = vpack.c.b16 %v623, %v619
        %v728 = vpack.c.b16 %v624, %v620
        %v729 = vpack.c.b16 %v629, %v625
        %v730 = vpack.c.b16 %v630, %v626
        %v731 = vpack.c.b16 %v631, %v627
        %v732 = vpack.c.b16 %v632, %v628
        %v733 = vpack.c.b16 %v637, %v633
        %v734 = vpack.c.b16 %v638, %v634
        %v735 = vpack.c.b16 %v639, %v635
        %v736 = vpack.c.b16 %v640, %v636
        %v737 = vpack.c.b16 %v645, %v641
        %v738 = vpack.c.b16 %v646, %v642
        %v739 = vpack.c.b16 %v647, %v643
        %v740 = vpack.c.b16 %v648, %v644
        %v741 = vpack.c.b16 %v653, %v649
        %v742 = vpack.c.b16 %v654, %v650
        %v743 = vpack.c.b16 %v655, %v651
        %v744 = vpack.c.b16 %v656, %v652
        %v745 = vpack.c.b16 %v661, %v657
        %v746 = vpack.c.b16 %v662, %v658
        %v747 = vpack.c.b16 %v663, %v659
        %v748 = vpack.c.b16 %v664, %v660
        %v749 = vpack.c.b16 %v669, %v665
        %v750 = vpack.c.b16 %v670, %v666
        %v751 = vpack.c.b16 %v671, %v667
        %v752 = vpack.c.b16 %v672, %v668
        %v753 = vpack.c.b16 %v677, %v673
        %v754 = vpack.c.b16 %v678, %v674
        %v755 = vpack.c.b16 %v679, %v675
        %v756 = vpack.c.b16 %v680, %v676
        %v757 = vpack.c.b16 %v685, %v681
        %v758 = vpack.c.b16 %v686, %v682
        %v759 = vpack.c.b16 %v687, %v683
        %v760 = vpack.c.b16 %v688, %v684
        %v761 = vpack.c.b16 %v693, %v689
        %v762 = vpack.c.b16 %v694, %v690
        %v763 = vpack.c.b16 %v695, %v691
        %v764 = vpack.c.b16 %v696, %v692
        %v765 = vpack.c.b16 %v701, %v697
        %v766 = vpack.c.b16 %v702, %v698
        %v767 = vpack.c.b16 %v703, %v699
        %v768 = vpack.c.b16 %v704, %v700
        %833 = vmatpush.bf16.msra.mxu0 %v733
        %834 = vmatpush.bf16.msra.mxu0 %v729
        %835 = vmatpush.bf16.msra.mxu0 %v725
        %836 = vmatpush.bf16.msra.mxu0 %v721
        %837 = vmatpush.bf16.msra.mxu0 %v717
        %838 = vmatpush.bf16.msra.mxu0 %v713
        %839 = vmatpush.bf16.msra.mxu0 %v709
        %840 = vmatpush.bf16.msra.mxu0 %v705
        %841 = vmatmul.bf16.gmra.mxu0 %v437
        %v842 = vpop.f32.mrf.mxu0
        %v843 = vadd.f32 %v505, %v842
        %v844 = vpop.f32.mrf.mxu0
        %845 = vdwg.mxu0
        %846 = vmatpush.bf16.msra.mxu0 %v765
        %847 = vmatpush.bf16.msra.mxu0 %v761
        %848 = vmatpush.bf16.msra.mxu0 %v757
        %849 = vmatpush.bf16.msra.mxu0 %v753
        %850 = vmatpush.bf16.msra.mxu0 %v749
        %851 = vmatpush.bf16.msra.mxu0 %v745
        %852 = vmatpush.bf16.msra.mxu0 %v741
        %853 = vmatpush.bf16.msra.mxu0 %v737
        %854 = vmatmul.bf16.gmra.mxu0 %v438
        %v855 = vpop.f32.mrf.mxu0
        %v856 = vadd.f32 %v843, %v855
        %v857 = vpop.f32.mrf.mxu0
        %858 = vdwg.mxu0
        %859 = vmatpush.bf16.msra.mxu0 %v734
        %860 = vmatpush.bf16.msra.mxu0 %v730
        %861 = vmatpush.bf16.msra.mxu0 %v726
        %862 = vmatpush.bf16.msra.mxu0 %v722
        %863 = vmatpush.bf16.msra.mxu0 %v718
        %864 = vmatpush.bf16.msra.mxu0 %v714
        %865 = vmatpush.bf16.msra.mxu0 %v710
        %866 = vmatpush.bf16.msra.mxu0 %v706
        %867 = vmatmul.bf16.gmra.mxu0 %v437
        %v868 = vpop.f32.mrf.mxu0
        %v869 = vadd.f32 %v506, %v868
        %v870 = vpop.f32.mrf.mxu0
        %871 = vdwg.mxu0
        %872 = vmatpush.bf16.msra.mxu0 %v766
        %873 = vmatpush.bf16.msra.mxu0 %v762
        %874 = vmatpush.bf16.msra.mxu0 %v758
        %875 = vmatpush.bf16.msra.mxu0 %v754
        %876 = vmatpush.bf16.msra.mxu0 %v750
        %877 = vmatpush.bf16.msra.mxu0 %v746
        %878 = vmatpush.bf16.msra.mxu0 %v742
        %879 = vmatpush.bf16.msra.mxu0 %v738
        %880 = vmatmul.bf16.gmra.mxu0 %v438
        %v881 = vpop.f32.mrf.mxu0
        %v882 = vadd.f32 %v869, %v881
        %v883 = vpop.f32.mrf.mxu0
        %884 = vdwg.mxu0
        %885 = vmatpush.bf16.msra.mxu0 %v735
        %886 = vmatpush.bf16.msra.mxu0 %v731
        %887 = vmatpush.bf16.msra.mxu0 %v727
        %888 = vmatpush.bf16.msra.mxu0 %v723
        %889 = vmatpush.bf16.msra.mxu0 %v719
        %890 = vmatpush.bf16.msra.mxu0 %v715
        %891 = vmatpush.bf16.msra.mxu0 %v711
        %892 = vmatpush.bf16.msra.mxu0 %v707
        %893 = vmatmul.bf16.gmra.mxu0 %v437
        %v894 = vpop.f32.mrf.mxu0
        %v895 = vadd.f32 %v507, %v894
        %v896 = vpop.f32.mrf.mxu0
        %897 = vdwg.mxu0
        %898 = vmatpush.bf16.msra.mxu0 %v767
        %899 = vmatpush.bf16.msra.mxu0 %v763
        %900 = vmatpush.bf16.msra.mxu0 %v759
        %901 = vmatpush.bf16.msra.mxu0 %v755
        %902 = vmatpush.bf16.msra.mxu0 %v751
        %903 = vmatpush.bf16.msra.mxu0 %v747
        %904 = vmatpush.bf16.msra.mxu0 %v743
        %905 = vmatpush.bf16.msra.mxu0 %v739
        %906 = vmatmul.bf16.gmra.mxu0 %v438
        %v907 = vpop.f32.mrf.mxu0
        %v908 = vadd.f32 %v895, %v907
        %v909 = vpop.f32.mrf.mxu0
        %910 = vdwg.mxu0
        %911 = vmatpush.bf16.msra.mxu0 %v736
        %912 = vmatpush.bf16.msra.mxu0 %v732
        %913 = vmatpush.bf16.msra.mxu0 %v728
        %914 = vmatpush.bf16.msra.mxu0 %v724
        %915 = vmatpush.bf16.msra.mxu0 %v720
        %916 = vmatpush.bf16.msra.mxu0 %v716
        %917 = vmatpush.bf16.msra.mxu0 %v712
        %918 = vmatpush.bf16.msra.mxu0 %v708
        %919 = vmatmul.bf16.gmra.mxu0 %v437
        %v920 = vpop.f32.mrf.mxu0
        %v921 = vadd.f32 %v508, %v920
        %v922 = vpop.f32.mrf.mxu0
        %923 = vdwg.mxu0
        %924 = vmatpush.bf16.msra.mxu0 %v768
        %925 = vmatpush.bf16.msra.mxu0 %v764
        %926 = vmatpush.bf16.msra.mxu0 %v760
        %927 = vmatpush.bf16.msra.mxu0 %v756
        %928 = vmatpush.bf16.msra.mxu0 %v752
        %929 = vmatpush.bf16.msra.mxu0 %v748
        %930 = vmatpush.bf16.msra.mxu0 %v744
        %931 = vmatpush.bf16.msra.mxu0 %v740
        %932 = vmatmul.bf16.gmra.mxu0 %v438
        %v933 = vpop.f32.mrf.mxu0
        %v934 = vadd.f32 %v921, %v933
        %v935 = vpop.f32.mrf.mxu0
        %936 = vdwg.mxu0
        %v937 = vxor.u32 %v856, 2147483648
        %v938 = vmul.f32 %v937, 1.442695
        %v939 = vpow.pop %v938
        %v940 = vadd.f32 %v939, 1.0
        %v941 = vrcp.pop %v940
        %v942 = vmul.f32 %v940, %v941
        %v943 = vsub.f32 1.0, %v942
        %v944 = vmul.f32 %v941, %v943
        %v945 = vadd.f32 %v941, %v944
        %vm946 = vweird.f32 %v940
        %vm947 = vweird.f32 %v941
        %vm948 = vmor %vm946, %vm947
        %v949 = vsel %vm948, %v941, %v945
        %v950 = vand.u32 2147483647, %v940
        %vm951 = vcmp.eq.f32.partialorder %v950, 8.507059e+37
        %v952 = vand.u32 %v940, 2147483648
        %v953 = vor.u32 1.1754944e-38, %v952
        %v954 = vsel %vm951, %v953, %v949
        %v955 = vmul.f32 1.0, %v954
        %v956 = vxor.u32 %v882, 2147483648
        %v957 = vmul.f32 %v956, 1.442695
        %v958 = vpow.pop %v957
        %v959 = vadd.f32 %v958, 1.0
        %v960 = vrcp.pop %v959
        %v961 = vmul.f32 %v959, %v960
        %v962 = vsub.f32 1.0, %v961
        %v963 = vmul.f32 %v960, %v962
        %v964 = vadd.f32 %v960, %v963
        %vm965 = vweird.f32 %v959
        %vm966 = vweird.f32 %v960
        %vm967 = vmor %vm965, %vm966
        %v968 = vsel %vm967, %v960, %v964
        %v969 = vand.u32 2147483647, %v959
        %vm970 = vcmp.eq.f32.partialorder %v969, 8.507059e+37
        %v971 = vand.u32 %v959, 2147483648
        %v972 = vor.u32 1.1754944e-38, %v971
        %v973 = vsel %vm970, %v972, %v968
        %v974 = vmul.f32 1.0, %v973
        %v975 = vtanh.pop %v908
        %v976 = vxor.u32 %v934, 2147483648
        %v977 = vmul.f32 %v976, 1.442695
        %v978 = vpow.pop %v977
        %v979 = vadd.f32 %v978, 1.0
        %v980 = vrcp.pop %v979
        %v981 = vmul.f32 %v979, %v980
        %v982 = vsub.f32 1.0, %v981
        %v983 = vmul.f32 %v980, %v982
        %v984 = vadd.f32 %v980, %v983
        %vm985 = vweird.f32 %v979
        %vm986 = vweird.f32 %v980
        %vm987 = vmor %vm985, %vm986
        %v988 = vsel %vm987, %v980, %v984
        %v989 = vand.u32 2147483647, %v979
        %vm990 = vcmp.eq.f32.partialorder %v989, 8.507059e+37
        %v991 = vand.u32 %v979, 2147483648
        %v992 = vor.u32 1.1754944e-38, %v991
        %v993 = vsel %vm990, %v992, %v988
        %v994 = vmul.f32 1.0, %v993
        %v995 = vmul.f32 %v974, %v434
        %v996 = vmul.f32 %v955, %v975
        %v997 = vadd.f32 %v995, %v996
        %v998 = vtanh.pop %v997
        %v999 = vmul.f32 %v994, %v998
        %v1000 = vmul.f32 %v436, %v999
        %v1001 = vsub.f32 1.0, %v436
        %v1002 = vmul.f32 %v1001, %v433
        %v1003 = vadd.f32 %v1000, %v1002
        %v1004 = vmul.f32 %v436, %v997
        %v1005 = vmul.f32 %v1001, %v434
        %v1006 = vadd.f32 %v1004, %v1005
        %v1007 = vld [vmem:[%s4] sm:$0xff]
        %v1008 = vld [vmem:[%s4 + $0x8] sm:$0xff]
        %v1009 = vld [vmem:[%s4 + $0x10] sm:$0xff]
        %v1010 = vld [vmem:[%s4 + $0x18] sm:$0xff]
        %v1011 = vld [vmem:[%s4 + $0x20] sm:$0xff]
        %v1012 = vld [vmem:[%s4 + $0x28] sm:$0xff]
        %v1013 = vld [vmem:[%s4 + $0x30] sm:$0xff]
        %v1014 = vld [vmem:[%s4 + $0x38] sm:$0xff]
        %v1015 = vld [vmem:[%s4 + $0x40] sm:$0xff]
        %v1016 = vld [vmem:[%s4 + $0x48] sm:$0xff]
        %v1017 = vld [vmem:[%s4 + $0x50] sm:$0xff]
        %v1018 = vld [vmem:[%s4 + $0x58] sm:$0xff]
        %v1019 = vld [vmem:[%s4 + $0x60] sm:$0xff]
        %v1020 = vld [vmem:[%s4 + $0x68] sm:$0xff]
        %v1021 = vld [vmem:[%s4 + $0x70] sm:$0xff]
        %v1022 = vld [vmem:[%s4 + $0x78] sm:$0xff]
        %v1024 = vrot.slane %v1003, 1
        %v1025 = vrot.slane %v1003, 2
        %v1026 = vrot.slane %v1003, 3
        %v1027 = vrot.slane %v1003, 4
        %v1028 = vrot.slane %v1003, 5
        %v1029 = vrot.slane %v1003, 6
        %v1030 = vrot.slane %v1003, 7
        %v1031 = vperm.slane %v1003, 0
        %v1032 = vperm.slane %v1024, 0
        %v1033 = vperm.slane %v1025, 0
        %v1034 = vperm.slane %v1026, 0
        %v1035 = vperm.slane %v1027, 0
        %v1036 = vperm.slane %v1028, 0
        %v1037 = vperm.slane %v1029, 0
        %v1038 = vperm.slane %v1030, 0
        %v1047 = vmul.f32 %v1007, %v1031
        %v1048 = vmul.f32 %v1008, %v1031
        %v1049 = vmul.f32 %v1009, %v1032
        %v1050 = vmul.f32 %v1010, %v1032
        %v1051 = vmul.f32 %v1011, %v1033
        %v1052 = vmul.f32 %v1012, %v1033
        %v1053 = vmul.f32 %v1013, %v1034
        %v1054 = vmul.f32 %v1014, %v1034
        %v1055 = vmul.f32 %v1015, %v1035
        %v1056 = vmul.f32 %v1016, %v1035
        %v1057 = vmul.f32 %v1017, %v1036
        %v1058 = vmul.f32 %v1018, %v1036
        %v1059 = vmul.f32 %v1019, %v1037
        %v1060 = vmul.f32 %v1020, %v1037
        %v1061 = vmul.f32 %v1021, %v1038
        %v1062 = vmul.f32 %v1022, %v1038
        %1063 = vadd.xlane.f32.xlu0 %v1047
        %v1064 = vpop.xlane.xlu0 %1063
        %1065 = vadd.xlane.f32.xlu0 %v1048
        %v1066 = vpop.xlane.xlu0 %1065
        %1067 = vadd.xlane.f32.xlu0 %v1049
        %v1068 = vpop.xlane.xlu0 %1067
        %1069 = vadd.xlane.f32.xlu0 %v1050
        %v1070 = vpop.xlane.xlu0 %1069
        %1071 = vadd.xlane.f32.xlu0 %v1051
        %v1072 = vpop.xlane.xlu0 %1071
        %1073 = vadd.xlane.f32.xlu0 %v1052
        %v1074 = vpop.xlane.xlu0 %1073
        %1075 = vadd.xlane.f32.xlu0 %v1053
        %v1076 = vpop.xlane.xlu0 %1075
        %1077 = vadd.xlane.f32.xlu0 %v1054
        %v1078 = vpop.xlane.xlu0 %1077
        %1079 = vadd.xlane.f32.xlu0 %v1055
        %v1080 = vpop.xlane.xlu0 %1079
        %1081 = vadd.xlane.f32.xlu0 %v1056
        %v1082 = vpop.xlane.xlu0 %1081
        %1083 = vadd.xlane.f32.xlu0 %v1057
        %v1084 = vpop.xlane.xlu0 %1083
        %1085 = vadd.xlane.f32.xlu0 %v1058
        %v1086 = vpop.xlane.xlu0 %1085
        %1087 = vadd.xlane.f32.xlu0 %v1059
        %v1088 = vpop.xlane.xlu0 %1087
        %1089 = vadd.xlane.f32.xlu0 %v1060
        %v1090 = vpop.xlane.xlu0 %1089
        %1091 = vadd.xlane.f32.xlu0 %v1061
        %v1092 = vpop.xlane.xlu0 %1091
        %1093 = vadd.xlane.f32.xlu0 %v1062
        %v1094 = vpop.xlane.xlu0 %1093
        %v1095 = vld [vmem:[%s1] sm:$0xff]
        %v1096 = vld [vmem:[%s1 + $0x8] sm:$0xff]
        %v1097 = vld [vmem:[%s1 + $0x10] sm:$0xff]
        %v1098 = vld [vmem:[%s1 + $0x18] sm:$0xff]
        %v1099 = vld [vmem:[%s1 + $0x20] sm:$0xff]
        %v1100 = vld [vmem:[%s1 + $0x28] sm:$0xff]
        %v1101 = vld [vmem:[%s1 + $0x30] sm:$0xff]
        %v1102 = vld [vmem:[%s1 + $0x38] sm:$0xff]
        %v1103 = vld [vmem:[%s1 + $0x40] sm:$0xff]
        %v1104 = vld [vmem:[%s1 + $0x48] sm:$0xff]
        %v1105 = vld [vmem:[%s1 + $0x50] sm:$0xff]
        %v1106 = vld [vmem:[%s1 + $0x58] sm:$0xff]
        %v1107 = vld [vmem:[%s1 + $0x60] sm:$0xff]
        %v1108 = vld [vmem:[%s1 + $0x68] sm:$0xff]
        %v1109 = vld [vmem:[%s1 + $0x70] sm:$0xff]
        %v1110 = vld [vmem:[%s1 + $0x78] sm:$0xff]
        %v1111 = vadd.f32 %v1064, %v1095
        %v1112 = vadd.f32 %v1066, %v1096
        %v1113 = vadd.f32 %v1068, %v1097
        %v1114 = vadd.f32 %v1070, %v1098
        %v1115 = vadd.f32 %v1072, %v1099
        %v1116 = vadd.f32 %v1074, %v1100
        %v1117 = vadd.f32 %v1076, %v1101
        %v1118 = vadd.f32 %v1078, %v1102
        %v1119 = vadd.f32 %v1080, %v1103
        %v1120 = vadd.f32 %v1082, %v1104
        %v1121 = vadd.f32 %v1084, %v1105
        %v1122 = vadd.f32 %v1086, %v1106
        %v1123 = vadd.f32 %v1088, %v1107
        %v1124 = vadd.f32 %v1090, %v1108
        %v1125 = vadd.f32 %v1092, %v1109
        %v1126 = vadd.f32 %v1094, %v1110
        %vm1127 = vcmask 7168
        %v1128 = vsel %vm1127, %v1111, -inf
        %v1129 = vsel %vm1127, %v1112, -inf
        %v1130 = vmax.f32 %v1128, %v1129
        %v1131 = vrot.slane %v1130, 4
        %v1132 = vmax.f32 %v1130, %v1131
        %v1133 = vrot.slane %v1132, 2
        %v1134 = vmax.f32 %v1132, %v1133
        %v1135 = vrot.slane %v1134, 1
        %v1136 = vmax.f32 %v1134, %v1135
        %v1137 = vsel %vm1127, %v1113, -inf
        %v1138 = vsel %vm1127, %v1114, -inf
        %v1139 = vmax.f32 %v1137, %v1138
        %v1140 = vrot.slane %v1139, 4
        %v1141 = vmax.f32 %v1139, %v1140
        %v1142 = vrot.slane %v1141, 2
        %v1143 = vmax.f32 %v1141, %v1142
        %v1144 = vrot.slane %v1143, 1
        %v1145 = vmax.f32 %v1143, %v1144
        %v1146 = vsel %vm1127, %v1115, -inf
        %v1147 = vsel %vm1127, %v1116, -inf
        %v1148 = vmax.f32 %v1146, %v1147
        %v1149 = vrot.slane %v1148, 4
        %v1150 = vmax.f32 %v1148, %v1149
        %v1151 = vrot.slane %v1150, 2
        %v1152 = vmax.f32 %v1150, %v1151
        %v1153 = vrot.slane %v1152, 1
        %v1154 = vmax.f32 %v1152, %v1153
        %v1155 = vsel %vm1127, %v1117, -inf
        %v1156 = vsel %vm1127, %v1118, -inf
        %v1157 = vmax.f32 %v1155, %v1156
        %v1158 = vrot.slane %v1157, 4
        %v1159 = vmax.f32 %v1157, %v1158
        %v1160 = vrot.slane %v1159, 2
        %v1161 = vmax.f32 %v1159, %v1160
        %v1162 = vrot.slane %v1161, 1
        %v1163 = vmax.f32 %v1161, %v1162
        %v1164 = vsel %vm1127, %v1119, -inf
        %v1165 = vsel %vm1127, %v1120, -inf
        %v1166 = vmax.f32 %v1164, %v1165
        %v1167 = vrot.slane %v1166, 4
        %v1168 = vmax.f32 %v1166, %v1167
        %v1169 = vrot.slane %v1168, 2
        %v1170 = vmax.f32 %v1168, %v1169
        %v1171 = vrot.slane %v1170, 1
        %v1172 = vmax.f32 %v1170, %v1171
        %v1173 = vsel %vm1127, %v1121, -inf
        %v1174 = vsel %vm1127, %v1122, -inf
        %v1175 = vmax.f32 %v1173, %v1174
        %v1176 = vrot.slane %v1175, 4
        %v1177 = vmax.f32 %v1175, %v1176
        %v1178 = vrot.slane %v1177, 2
        %v1179 = vmax.f32 %v1177, %v1178
        %v1180 = vrot.slane %v1179, 1
        %v1181 = vmax.f32 %v1179, %v1180
        %v1182 = vsel %vm1127, %v1123, -inf
        %v1183 = vsel %vm1127, %v1124, -inf
        %v1184 = vmax.f32 %v1182, %v1183
        %v1185 = vrot.slane %v1184, 4
        %v1186 = vmax.f32 %v1184, %v1185
        %v1187 = vrot.slane %v1186, 2
        %v1188 = vmax.f32 %v1186, %v1187
        %v1189 = vrot.slane %v1188, 1
        %v1190 = vmax.f32 %v1188, %v1189
        %v1191 = vsel %vm1127, %v1125, -inf
        %v1192 = vsel %vm1127, %v1126, -inf
        %v1193 = vmax.f32 %v1191, %v1192
        %v1194 = vrot.slane %v1193, 4
        %v1195 = vmax.f32 %v1193, %v1194
        %v1196 = vrot.slane %v1195, 2
        %v1197 = vmax.f32 %v1195, %v1196
        %v1198 = vrot.slane %v1197, 1
        %v1199 = vmax.f32 %v1197, %v1198
        %v1200 = vsub.f32 %v1111, %v1136
        %v1201 = vsub.f32 %v1112, %v1136
        %v1202 = vsub.f32 %v1113, %v1145
        %v1203 = vsub.f32 %v1114, %v1145
        %v1204 = vsub.f32 %v1115, %v1154
        %v1205 = vsub.f32 %v1116, %v1154
        %v1206 = vsub.f32 %v1117, %v1163
        %v1207 = vsub.f32 %v1118, %v1163
        %v1208 = vsub.f32 %v1119, %v1172
        %v1209 = vsub.f32 %v1120, %v1172
        %v1210 = vsub.f32 %v1121, %v1181
        %v1211 = vsub.f32 %v1122, %v1181
        %v1212 = vsub.f32 %v1123, %v1190
        %v1213 = vsub.f32 %v1124, %v1190
        %v1214 = vsub.f32 %v1125, %v1199
        %v1215 = vsub.f32 %v1126, %v1199
        %v1216 = vmul.f32 %v1200, 1.442695
        %v1217 = vpow.pop %v1216
        %v1218 = vmul.f32 %v1201, 1.442695
        %v1219 = vpow.pop %v1218
        %v1220 = vmul.f32 %v1202, 1.442695
        %v1221 = vpow.pop %v1220
        %v1222 = vmul.f32 %v1203, 1.442695
        %v1223 = vpow.pop %v1222
        %v1224 = vmul.f32 %v1204, 1.442695
        %v1225 = vpow.pop %v1224
        %v1226 = vmul.f32 %v1205, 1.442695
        %v1227 = vpow.pop %v1226
        %v1228 = vmul.f32 %v1206, 1.442695
        %v1229 = vpow.pop %v1228
        %v1230 = vmul.f32 %v1207, 1.442695
        %v1231 = vpow.pop %v1230
        %v1232 = vmul.f32 %v1208, 1.442695
        %v1233 = vpow.pop %v1232
        %v1234 = vmul.f32 %v1209, 1.442695
        %v1235 = vpow.pop %v1234
        %v1236 = vmul.f32 %v1210, 1.442695
        %v1237 = vpow.pop %v1236
        %v1238 = vmul.f32 %v1211, 1.442695
        %v1239 = vpow.pop %v1238
        %v1240 = vmul.f32 %v1212, 1.442695
        %v1241 = vpow.pop %v1240
        %v1242 = vmul.f32 %v1213, 1.442695
        %v1243 = vpow.pop %v1242
        %v1244 = vmul.f32 %v1214, 1.442695
        %v1245 = vpow.pop %v1244
        %v1246 = vmul.f32 %v1215, 1.442695
        %v1247 = vpow.pop %v1246
        %v1248 = vsel %vm1127, %v1217, 0.0
        %v1249 = vsel %vm1127, %v1219, 0.0
        %v1250 = vadd.f32 %v1248, %v1249
        %v1251 = vrot.slane %v1250, 4
        %v1252 = vadd.f32 %v1250, %v1251
        %v1253 = vrot.slane %v1252, 2
        %v1254 = vadd.f32 %v1252, %v1253
        %v1255 = vrot.slane %v1254, 1
        %v1256 = vadd.f32 %v1254, %v1255
        %v1257 = vsel %vm1127, %v1221, 0.0
        %v1258 = vsel %vm1127, %v1223, 0.0
        %v1259 = vadd.f32 %v1257, %v1258
        %v1260 = vrot.slane %v1259, 4
        %v1261 = vadd.f32 %v1259, %v1260
        %v1262 = vrot.slane %v1261, 2
        %v1263 = vadd.f32 %v1261, %v1262
        %v1264 = vrot.slane %v1263, 1
        %v1265 = vadd.f32 %v1263, %v1264
        %v1266 = vsel %vm1127, %v1225, 0.0
        %v1267 = vsel %vm1127, %v1227, 0.0
        %v1268 = vadd.f32 %v1266, %v1267
        %v1269 = vrot.slane %v1268, 4
        %v1270 = vadd.f32 %v1268, %v1269
        %v1271 = vrot.slane %v1270, 2
        %v1272 = vadd.f32 %v1270, %v1271
        %v1273 = vrot.slane %v1272, 1
        %v1274 = vadd.f32 %v1272, %v1273
        %v1275 = vsel %vm1127, %v1229, 0.0
        %v1276 = vsel %vm1127, %v1231, 0.0
        %v1277 = vadd.f32 %v1275, %v1276
        %v1278 = vrot.slane %v1277, 4
        %v1279 = vadd.f32 %v1277, %v1278
        %v1280 = vrot.slane %v1279, 2
        %v1281 = vadd.f32 %v1279, %v1280
        %v1282 = vrot.slane %v1281, 1
        %v1283 = vadd.f32 %v1281, %v1282
        %v1284 = vsel %vm1127, %v1233, 0.0
        %v1285 = vsel %vm1127, %v1235, 0.0
        %v1286 = vadd.f32 %v1284, %v1285
        %v1287 = vrot.slane %v1286, 4
        %v1288 = vadd.f32 %v1286, %v1287
        %v1289 = vrot.slane %v1288, 2
        %v1290 = vadd.f32 %v1288, %v1289
        %v1291 = vrot.slane %v1290, 1
        %v1292 = vadd.f32 %v1290, %v1291
        %v1293 = vsel %vm1127, %v1237, 0.0
        %v1294 = vsel %vm1127, %v1239, 0.0
        %v1295 = vadd.f32 %v1293, %v1294
        %v1296 = vrot.slane %v1295, 4
        %v1297 = vadd.f32 %v1295, %v1296
        %v1298 = vrot.slane %v1297, 2
        %v1299 = vadd.f32 %v1297, %v1298
        %v1300 = vrot.slane %v1299, 1
        %v1301 = vadd.f32 %v1299, %v1300
        %v1302 = vsel %vm1127, %v1241, 0.0
        %v1303 = vsel %vm1127, %v1243, 0.0
        %v1304 = vadd.f32 %v1302, %v1303
        %v1305 = vrot.slane %v1304, 4
        %v1306 = vadd.f32 %v1304, %v1305
        %v1307 = vrot.slane %v1306, 2
        %v1308 = vadd.f32 %v1306, %v1307
        %v1309 = vrot.slane %v1308, 1
        %v1310 = vadd.f32 %v1308, %v1309
        %v1311 = vsel %vm1127, %v1245, 0.0
        %v1312 = vsel %vm1127, %v1247, 0.0
        %v1313 = vadd.f32 %v1311, %v1312
        %v1314 = vrot.slane %v1313, 4
        %v1315 = vadd.f32 %v1313, %v1314
        %v1316 = vrot.slane %v1315, 2
        %v1317 = vadd.f32 %v1315, %v1316
        %v1318 = vrot.slane %v1317, 1
        %v1319 = vadd.f32 %v1317, %v1318
        %v1320 = vrcp.pop %v1256
        %v1321 = vrcp.pop %v1265
        %v1322 = vrcp.pop %v1274
        %v1323 = vrcp.pop %v1283
        %v1324 = vrcp.pop %v1292
        %v1325 = vrcp.pop %v1301
        %v1326 = vrcp.pop %v1310
        %v1327 = vrcp.pop %v1319
        %v1328 = vmul.f32 %v1217, %v1320
        %v1329 = vmul.f32 %v1219, %v1320
        %v1330 = vmul.f32 %v1221, %v1321
        %v1331 = vmul.f32 %v1223, %v1321
        %v1332 = vmul.f32 %v1225, %v1322
        %v1333 = vmul.f32 %v1227, %v1322
        %v1334 = vmul.f32 %v1229, %v1323
        %v1335 = vmul.f32 %v1231, %v1323
        %v1336 = vmul.f32 %v1233, %v1324
        %v1337 = vmul.f32 %v1235, %v1324
        %v1338 = vmul.f32 %v1237, %v1325
        %v1339 = vmul.f32 %v1239, %v1325
        %v1340 = vmul.f32 %v1241, %v1326
        %v1341 = vmul.f32 %v1243, %v1326
        %v1342 = vmul.f32 %v1245, %v1327
        %v1343 = vmul.f32 %v1247, %v1327
        %1345 = vset.pattern.permute.xlu0 0
        %1346 = vperm.xlu0 %1345, %v1328
        %v1347 = vpop.permute.xlu0 %1346
        %1350 = vset.pattern.permute.xlu0 0
        %1351 = vperm.xlu0 %1350, %v1329
        %v1352 = vpop.permute.xlu0 %1351
        %1355 = vset.pattern.permute.xlu0 0
        %1356 = vperm.xlu0 %1355, %v1330
        %v1357 = vpop.permute.xlu0 %1356
        %1360 = vset.pattern.permute.xlu0 0
        %1361 = vperm.xlu0 %1360, %v1331
        %v1362 = vpop.permute.xlu0 %1361
        %1365 = vset.pattern.permute.xlu0 0
        %1366 = vperm.xlu0 %1365, %v1332
        %v1367 = vpop.permute.xlu0 %1366
        %1370 = vset.pattern.permute.xlu0 0
        %1371 = vperm.xlu0 %1370, %v1333
        %v1372 = vpop.permute.xlu0 %1371
        %1375 = vset.pattern.permute.xlu0 0
        %1376 = vperm.xlu0 %1375, %v1334
        %v1377 = vpop.permute.xlu0 %1376
        %1380 = vset.pattern.permute.xlu0 0
        %1381 = vperm.xlu0 %1380, %v1335
        %v1382 = vpop.permute.xlu0 %1381
        %1385 = vset.pattern.permute.xlu0 0
        %1386 = vperm.xlu0 %1385, %v1336
        %v1387 = vpop.permute.xlu0 %1386
        %1390 = vset.pattern.permute.xlu0 0
        %1391 = vperm.xlu0 %1390, %v1337
        %v1392 = vpop.permute.xlu0 %1391
        %1395 = vset.pattern.permute.xlu0 0
        %1396 = vperm.xlu0 %1395, %v1338
        %v1397 = vpop.permute.xlu0 %1396
        %1400 = vset.pattern.permute.xlu0 0
        %1401 = vperm.xlu0 %1400, %v1339
        %v1402 = vpop.permute.xlu0 %1401
        %1405 = vset.pattern.permute.xlu0 0
        %1406 = vperm.xlu0 %1405, %v1340
        %v1407 = vpop.permute.xlu0 %1406
        %1410 = vset.pattern.permute.xlu0 0
        %1411 = vperm.xlu0 %1410, %v1341
        %v1412 = vpop.permute.xlu0 %1411
        %1415 = vset.pattern.permute.xlu0 0
        %1416 = vperm.xlu0 %1415, %v1342
        %v1417 = vpop.permute.xlu0 %1416
        %1420 = vset.pattern.permute.xlu0 0
        %1421 = vperm.xlu0 %1420, %v1343
        %v1422 = vpop.permute.xlu0 %1421
        %v1424 = vmul.f32 %v1007, %v1347
        %v1425 = vmul.f32 %v1008, %v1352
        %v1426 = vmul.f32 %v1009, %v1357
        %v1427 = vmul.f32 %v1010, %v1362
        %v1428 = vmul.f32 %v1011, %v1367
        %v1429 = vmul.f32 %v1012, %v1372
        %v1430 = vmul.f32 %v1013, %v1377
        %v1431 = vmul.f32 %v1014, %v1382
        %v1432 = vmul.f32 %v1015, %v1387
        %v1433 = vmul.f32 %v1016, %v1392
        %v1434 = vmul.f32 %v1017, %v1397
        %v1435 = vmul.f32 %v1018, %v1402
        %v1436 = vmul.f32 %v1019, %v1407
        %v1437 = vmul.f32 %v1020, %v1412
        %v1438 = vmul.f32 %v1021, %v1417
        %v1439 = vmul.f32 %v1022, %v1422
        %v1440 = vadd.f32 %v1424, %v1425
        %v1441 = vrot.slane %v1440, 4
        %v1442 = vadd.f32 %v1440, %v1441
        %v1443 = vrot.slane %v1442, 2
        %v1444 = vadd.f32 %v1442, %v1443
        %v1445 = vrot.slane %v1444, 1
        %v1446 = vadd.f32 %v1444, %v1445
        %v1447 = vadd.f32 %v1426, %v1427
        %v1448 = vrot.slane %v1447, 4
        %v1449 = vadd.f32 %v1447, %v1448
        %v1450 = vrot.slane %v1449, 2
        %v1451 = vadd.f32 %v1449, %v1450
        %v1452 = vrot.slane %v1451, 1
        %v1453 = vadd.f32 %v1451, %v1452
        %v1454 = vadd.f32 %v1428, %v1429
        %v1455 = vrot.slane %v1454, 4
        %v1456 = vadd.f32 %v1454, %v1455
        %v1457 = vrot.slane %v1456, 2
        %v1458 = vadd.f32 %v1456, %v1457
        %v1459 = vrot.slane %v1458, 1
        %v1460 = vadd.f32 %v1458, %v1459
        %v1461 = vadd.f32 %v1430, %v1431
        %v1462 = vrot.slane %v1461, 4
        %v1463 = vadd.f32 %v1461, %v1462
        %v1464 = vrot.slane %v1463, 2
        %v1465 = vadd.f32 %v1463, %v1464
        %v1466 = vrot.slane %v1465, 1
        %v1467 = vadd.f32 %v1465, %v1466
        %v1468 = vadd.f32 %v1432, %v1433
        %v1469 = vrot.slane %v1468, 4
        %v1470 = vadd.f32 %v1468, %v1469
        %v1471 = vrot.slane %v1470, 2
        %v1472 = vadd.f32 %v1470, %v1471
        %v1473 = vrot.slane %v1472, 1
        %v1474 = vadd.f32 %v1472, %v1473
        %v1475 = vadd.f32 %v1434, %v1435
        %v1476 = vrot.slane %v1475, 4
        %v1477 = vadd.f32 %v1475, %v1476
        %v1478 = vrot.slane %v1477, 2
        %v1479 = vadd.f32 %v1477, %v1478
        %v1480 = vrot.slane %v1479, 1
        %v1481 = vadd.f32 %v1479, %v1480
        %v1482 = vadd.f32 %v1436, %v1437
        %v1483 = vrot.slane %v1482, 4
        %v1484 = vadd.f32 %v1482, %v1483
        %v1485 = vrot.slane %v1484, 2
        %v1486 = vadd.f32 %v1484, %v1485
        %v1487 = vrot.slane %v1486, 1
        %v1488 = vadd.f32 %v1486, %v1487
        %v1489 = vadd.f32 %v1438, %v1439
        %v1490 = vrot.slane %v1489, 4
        %v1491 = vadd.f32 %v1489, %v1490
        %v1492 = vrot.slane %v1491, 2
        %v1493 = vadd.f32 %v1491, %v1492
        %v1494 = vrot.slane %v1493, 1
        %v1495 = vadd.f32 %v1493, %v1494
        %vm1504 = vcmask 1041409
        %v1505 = vsel %vm1504, %v1453, %v1446
        %vm1506 = vcmask 1042434
        %v1507 = vsel %vm1506, %v1460, %v1505
        %vm1508 = vcmask 1043459
        %v1509 = vsel %vm1508, %v1467, %v1507
        %vm1510 = vcmask 1044484
        %v1511 = vsel %vm1510, %v1474, %v1509
        %vm1512 = vcmask 1045509
        %v1513 = vsel %vm1512, %v1481, %v1511
        %vm1514 = vcmask 1046534
        %v1515 = vsel %vm1514, %v1488, %v1513
        %vm1516 = vcmask 1047559
        %v1517 = vsel %vm1516, %v1495, %v1515
        %v1519 = vpack.c.bf16 %v1517, %v1517
        %v1520 = vpack.c.bf16 %v1003, %v1003
        %v1521 = vld [vmem:[%s7] sm:$0xf]
        %v1522 = vld [vmem:[%s7 + $0x4] sm:$0xf]
        %v1523 = vld [vmem:[%s7 + $0x8] sm:$0xf]
        %v1524 = vld [vmem:[%s7 + $0xc] sm:$0xf]
        %v1525 = vld [vmem:[%s7 + $0x10] sm:$0xf]
        %v1526 = vld [vmem:[%s7 + $0x14] sm:$0xf]
        %v1527 = vld [vmem:[%s7 + $0x18] sm:$0xf]
        %v1528 = vld [vmem:[%s7 + $0x1c] sm:$0xf]
        %v1529 = vld [vmem:[%s7 + $0x20] sm:$0xf]
        %v1530 = vld [vmem:[%s7 + $0x24] sm:$0xf]
        %v1531 = vld [vmem:[%s7 + $0x28] sm:$0xf]
        %v1532 = vld [vmem:[%s7 + $0x2c] sm:$0xf]
        %v1533 = vld [vmem:[%s7 + $0x30] sm:$0xf]
        %v1534 = vld [vmem:[%s7 + $0x34] sm:$0xf]
        %v1535 = vld [vmem:[%s7 + $0x38] sm:$0xf]
        %v1536 = vld [vmem:[%s7 + $0x3c] sm:$0xf]
        %v1537 = vld [vmem:[%s7 + $0x40] sm:$0xf]
        %v1538 = vld [vmem:[%s7 + $0x44] sm:$0xf]
        %v1539 = vld [vmem:[%s7 + $0x48] sm:$0xf]
        %v1540 = vld [vmem:[%s7 + $0x4c] sm:$0xf]
        %v1541 = vld [vmem:[%s7 + $0x50] sm:$0xf]
        %v1542 = vld [vmem:[%s7 + $0x54] sm:$0xf]
        %v1543 = vld [vmem:[%s7 + $0x58] sm:$0xf]
        %v1544 = vld [vmem:[%s7 + $0x5c] sm:$0xf]
        %v1545 = vld [vmem:[%s7 + $0x60] sm:$0xf]
        %v1546 = vld [vmem:[%s7 + $0x64] sm:$0xf]
        %v1547 = vld [vmem:[%s7 + $0x68] sm:$0xf]
        %v1548 = vld [vmem:[%s7 + $0x6c] sm:$0xf]
        %v1549 = vld [vmem:[%s7 + $0x70] sm:$0xf]
        %v1550 = vld [vmem:[%s7 + $0x74] sm:$0xf]
        %v1551 = vld [vmem:[%s7 + $0x78] sm:$0xf]
        %v1552 = vld [vmem:[%s7 + $0x7c] sm:$0xf]
        %v1553 = vld [vmem:[%s8] sm:$0x1]
        %v1555 = vperm.slane %v1553, 0
        %v1589 = vunpack.c.l.b16 %v1521
        %v1590 = vunpack.c.l.b16 %v1522
        %v1591 = vunpack.c.l.b16 %v1523
        %v1592 = vunpack.c.l.b16 %v1524
        %v1593 = vunpack.c.l.b16 %v1525
        %v1594 = vunpack.c.l.b16 %v1526
        %v1595 = vunpack.c.l.b16 %v1527
        %v1596 = vunpack.c.l.b16 %v1528
        %v1597 = vunpack.c.l.b16 %v1529
        %v1598 = vunpack.c.l.b16 %v1530
        %v1599 = vunpack.c.l.b16 %v1531
        %v1600 = vunpack.c.l.b16 %v1532
        %v1601 = vunpack.c.l.b16 %v1533
        %v1602 = vunpack.c.l.b16 %v1534
        %v1603 = vunpack.c.l.b16 %v1535
        %v1604 = vunpack.c.l.b16 %v1536
        %v1605 = vunpack.c.l.b16 %v1537
        %v1606 = vunpack.c.l.b16 %v1538
        %v1607 = vunpack.c.l.b16 %v1539
        %v1608 = vunpack.c.l.b16 %v1540
        %v1609 = vunpack.c.l.b16 %v1541
        %v1610 = vunpack.c.l.b16 %v1542
        %v1611 = vunpack.c.l.b16 %v1543
        %v1612 = vunpack.c.l.b16 %v1544
        %v1613 = vunpack.c.l.b16 %v1545
        %v1614 = vunpack.c.l.b16 %v1546
        %v1615 = vunpack.c.l.b16 %v1547
        %v1616 = vunpack.c.l.b16 %v1548
        %v1617 = vunpack.c.l.b16 %v1549
        %v1618 = vunpack.c.l.b16 %v1550
        %v1619 = vunpack.c.l.b16 %v1551
        %v1620 = vunpack.c.l.b16 %v1552
        %v1621 = vpack.c.b16 %v1590, %v1589
        %v1622 = vpack.c.b16 %v1592, %v1591
        %v1623 = vpack.c.b16 %v1594, %v1593
        %v1624 = vpack.c.b16 %v1596, %v1595
        %v1625 = vpack.c.b16 %v1598, %v1597
        %v1626 = vpack.c.b16 %v1600, %v1599
        %v1627 = vpack.c.b16 %v1602, %v1601
        %v1628 = vpack.c.b16 %v1604, %v1603
        %v1629 = vpack.c.b16 %v1606, %v1605
        %v1630 = vpack.c.b16 %v1608, %v1607
        %v1631 = vpack.c.b16 %v1610, %v1609
        %v1632 = vpack.c.b16 %v1612, %v1611
        %v1633 = vpack.c.b16 %v1614, %v1613
        %v1634 = vpack.c.b16 %v1616, %v1615
        %v1635 = vpack.c.b16 %v1618, %v1617
        %v1636 = vpack.c.b16 %v1620, %v1619
        %1653 = vmatpush.bf16.msra.mxu0 %v1628
        %1654 = vmatpush.bf16.msra.mxu0 %v1627
        %1655 = vmatpush.bf16.msra.mxu0 %v1626
        %1656 = vmatpush.bf16.msra.mxu0 %v1625
        %1657 = vmatpush.bf16.msra.mxu0 %v1624
        %1658 = vmatpush.bf16.msra.mxu0 %v1623
        %1659 = vmatpush.bf16.msra.mxu0 %v1622
        %1660 = vmatpush.bf16.msra.mxu0 %v1621
        %1661 = vmatmul.bf16.gmra.mxu0 %v1519
        %v1662 = vpop.f32.mrf.mxu0
        %v1663 = vadd.f32 %v1555, %v1662
        %v1664 = vpop.f32.mrf.mxu0
        %1665 = vdwg.mxu0
        %1666 = vmatpush.bf16.msra.mxu0 %v1636
        %1667 = vmatpush.bf16.msra.mxu0 %v1635
        %1668 = vmatpush.bf16.msra.mxu0 %v1634
        %1669 = vmatpush.bf16.msra.mxu0 %v1633
        %1670 = vmatpush.bf16.msra.mxu0 %v1632
        %1671 = vmatpush.bf16.msra.mxu0 %v1631
        %1672 = vmatpush.bf16.msra.mxu0 %v1630
        %1673 = vmatpush.bf16.msra.mxu0 %v1629
        %1674 = vmatmul.bf16.gmra.mxu0 %v1520
        %v1675 = vpop.f32.mrf.mxu0
        %v1676 = vadd.f32 %v1663, %v1675
        %v1677 = vpop.f32.mrf.mxu0
        %1678 = vdwg.mxu0
        %v1679 = vtanh.pop %v1676
        %v1680 = vpack.c.bf16 %v1679, %v1679
        %v1681 = vld [vmem:[%s9] sm:$0xff]
        %v1682 = vld [vmem:[%s9 + $0x8] sm:$0xff]
        %v1683 = vld [vmem:[%s9 + $0x10] sm:$0xff]
        %v1684 = vld [vmem:[%s9 + $0x18] sm:$0xff]
        %v1685 = vld [vmem:[%s9 + $0x20] sm:$0xff]
        %v1686 = vld [vmem:[%s9 + $0x28] sm:$0xff]
        %v1687 = vld [vmem:[%s9 + $0x30] sm:$0xff]
        %v1688 = vld [vmem:[%s9 + $0x38] sm:$0xff]
        %v1689 = vld [vmem:[%s9 + $0x40] sm:$0xff]
        %v1690 = vld [vmem:[%s9 + $0x48] sm:$0xff]
        %v1691 = vld [vmem:[%s9 + $0x50] sm:$0xff]
        %v1692 = vld [vmem:[%s9 + $0x58] sm:$0xff]
        %v1693 = vld [vmem:[%s9 + $0x60] sm:$0xff]
        %v1694 = vld [vmem:[%s9 + $0x68] sm:$0xff]
        %v1695 = vld [vmem:[%s9 + $0x70] sm:$0xff]
        %v1696 = vld [vmem:[%s9 + $0x78] sm:$0xff]
        %v1697 = vld [vmem:[%s10] sm:$0x3]
        %v1699 = vperm.slane %v1697, 0
        %v1700 = vperm.slane %v1697, 1
        %v1719 = vunpack.c.l.b16 %v1681
        %v1720 = vunpack.c.h.b16 %v1681
        %v1721 = vunpack.c.l.b16 %v1682
        %v1722 = vunpack.c.h.b16 %v1682
        %v1723 = vunpack.c.l.b16 %v1683
        %v1724 = vunpack.c.h.b16 %v1683
        %v1725 = vunpack.c.l.b16 %v1684
        %v1726 = vunpack.c.h.b16 %v1684
        %v1727 = vunpack.c.l.b16 %v1685
        %v1728 = vunpack.c.h.b16 %v1685
        %v1729 = vunpack.c.l.b16 %v1686
        %v1730 = vunpack.c.h.b16 %v1686
        %v1731 = vunpack.c.l.b16 %v1687
        %v1732 = vunpack.c.h.b16 %v1687
        %v1733 = vunpack.c.l.b16 %v1688
        %v1734 = vunpack.c.h.b16 %v1688
        %v1735 = vunpack.c.l.b16 %v1689
        %v1736 = vunpack.c.h.b16 %v1689
        %v1737 = vunpack.c.l.b16 %v1690
        %v1738 = vunpack.c.h.b16 %v1690
        %v1739 = vunpack.c.l.b16 %v1691
        %v1740 = vunpack.c.h.b16 %v1691
        %v1741 = vunpack.c.l.b16 %v1692
        %v1742 = vunpack.c.h.b16 %v1692
        %v1743 = vunpack.c.l.b16 %v1693
        %v1744 = vunpack.c.h.b16 %v1693
        %v1745 = vunpack.c.l.b16 %v1694
        %v1746 = vunpack.c.h.b16 %v1694
        %v1747 = vunpack.c.l.b16 %v1695
        %v1748 = vunpack.c.h.b16 %v1695
        %v1749 = vunpack.c.l.b16 %v1696
        %v1750 = vunpack.c.h.b16 %v1696
        %v1751 = vpack.c.b16 %v1721, %v1719
        %v1752 = vpack.c.b16 %v1722, %v1720
        %v1753 = vpack.c.b16 %v1725, %v1723
        %v1754 = vpack.c.b16 %v1726, %v1724
        %v1755 = vpack.c.b16 %v1729, %v1727
        %v1756 = vpack.c.b16 %v1730, %v1728
        %v1757 = vpack.c.b16 %v1733, %v1731
        %v1758 = vpack.c.b16 %v1734, %v1732
        %v1759 = vpack.c.b16 %v1737, %v1735
        %v1760 = vpack.c.b16 %v1738, %v1736
        %v1761 = vpack.c.b16 %v1741, %v1739
        %v1762 = vpack.c.b16 %v1742, %v1740
        %v1763 = vpack.c.b16 %v1745, %v1743
        %v1764 = vpack.c.b16 %v1746, %v1744
        %v1765 = vpack.c.b16 %v1749, %v1747
        %v1766 = vpack.c.b16 %v1750, %v1748
        %1783 = vmatpush.bf16.msra.mxu0 %v1765
        %1784 = vmatpush.bf16.msra.mxu0 %v1763
        %1785 = vmatpush.bf16.msra.mxu0 %v1761
        %1786 = vmatpush.bf16.msra.mxu0 %v1759
        %1787 = vmatpush.bf16.msra.mxu0 %v1757
        %1788 = vmatpush.bf16.msra.mxu0 %v1755
        %1789 = vmatpush.bf16.msra.mxu0 %v1753
        %1790 = vmatpush.bf16.msra.mxu0 %v1751
        %1791 = vmatmul.bf16.gmra.mxu0 %v1680
        %v1792 = vpop.f32.mrf.mxu0
        %v1793 = vadd.f32 %v1699, %v1792
        %v1794 = vpop.f32.mrf.mxu0
        %1795 = vdwg.mxu0
        %1796 = vmatpush.bf16.msra.mxu0 %v1766
        %1797 = vmatpush.bf16.msra.mxu0 %v1764
        %1798 = vmatpush.bf16.msra.mxu0 %v1762
        %1799 = vmatpush.bf16.msra.mxu0 %v1760
        %1800 = vmatpush.bf16.msra.mxu0 %v1758
        %1801 = vmatpush.bf16.msra.mxu0 %v1756
        %1802 = vmatpush.bf16.msra.mxu0 %v1754
        %1803 = vmatpush.bf16.msra.mxu0 %v1752
        %1804 = vmatmul.bf16.gmra.mxu0 %v1680
        %v1805 = vpop.f32.mrf.mxu0
        %v1806 = vadd.f32 %v1700, %v1805
        %v1807 = vpop.f32.mrf.mxu0
        %1808 = vdwg.mxu0
        %v1809 = vmax.f32 %v1793, %v1806
        %1810 = vmax.xlane.f32.xlu0 %v1809
        %v1811 = vpop.xlane.xlu0 %1810
        %v1812 = vsub.f32 %v1793, %v1811
        %v1813 = vsub.f32 %v1806, %v1811
        %v1814 = vmul.f32 %v1812, 1.442695
        %v1815 = vpow.pop %v1814
        %v1816 = vmul.f32 %v1813, 1.442695
        %v1817 = vpow.pop %v1816
        %v1818 = vadd.f32 %v1815, %v1817
        %1819 = vadd.xlane.f32.xlu0 %v1818
        %v1820 = vpop.xlane.xlu0 %1819
        %v1821 = vlog2.pop %v1820
        %v1822 = vmul.f32 %v1821, 0.6931472
        %v1823 = vadd.f32 %v1822, %v1811
        %v1824 = vsub.f32 %v1793, %v1823
        %v1825 = vsub.f32 %v1806, %v1823
        %1826 = vst [vmem:[%s407] sm:$0xff] %v1824
        %1827 = vst [vmem:[%s407 + $0x8] sm:$0xff] %v1825
        %1828 = vst [vmem:[%s424] sm:$0xff] %v1679
        %1829 = vst [vmem:[%s424 + $0x8] sm:$0xff] %v1006
        %1830 = vst [vmem:[#allocation2] sm:$0xff] %v1679
        %1831 = vst [vmem:[#allocation3] sm:$0xff] %v1006
        %s1832 = sand.u32 %s271, 1
        %s1833 = scalar_lea.sflag [#allocation5], %s1832
        %s1834 = sand.u32 %s271, 1
        %s1835 = smul.addr %s1834, 16
        %s1836 = scalar_lea.vmem [#allocation4], %s1835
        %p1837 = scmp.lt.s32.totalorder %s27, 3
        %s1838 = scalar_select %p1837, %s27, 3
        %s1839 = smul.addr %s1838, 2
        %s1840 = smul.addr %s1839, 8
        %s1841 = scalar_lea.vmem %s12, %s1840
        // Predicated region
        $region69: #{attention_decoder_lstm_fused.1} parent=63 // pred_check
          %p1842 = pneg %p281
        $region70: #{attention_decoder_lstm_fused.1} parent=63 // pred_check_branch
          %1844 = sbr.rel (%p1842) target = $region72
        $region71: #{attention_decoder_lstm_fused.1} parent=63 // pred_region
          %1846 = vsyncadd %s1833, 0
          %s1847 = smul.addr %s27, 2
          %s1848 = smul.addr %s1847, 8
          %s1849 = scalar_lea.hbm %s11, %s1848
          %s1851 = sshll.u32 %s1836, 4
          %s1852 = int_to_ptr.vmem [resolvable:$true] %s1851
          %s1853 = sshll.u32 %s1849, 4
          %s1854 = int_to_ptr.hbm [resolvable:$true] %s1853
          %1856 = dma.vmem_to_hbm [thread:$0]  %s1852, 256, %s1854, %s1833
        $region72: #{attention_decoder_lstm_fused.1} parent=63 // pred_fallthru
          _
        // Predicated region
        $region73: #{attention_decoder_lstm_fused.1} parent=63 // pred_check
          %p1857 = pneg %p307
        $region74: #{attention_decoder_lstm_fused.1} parent=63 // pred_check_branch
          %1859 = sbr.rel (%p1857) target = $region76
        $region75: #{attention_decoder_lstm_fused.1} parent=63 // pred_region
          _
        $region76: #{attention_decoder_lstm_fused.1} parent=63 // pred_fallthru
          _
      $region64: #{attention_decoder_lstm_fused.1} parent=5 // pred_fallthru
        _
      %p1860 = scmp.le.s32.totalorder 2, %s22
      // Predicated region
      $region77: #{attention_decoder_lstm_fused.1} parent=5 // pred_check
        %p1861 = pneg %p1860
      $region78: #{attention_decoder_lstm_fused.1} parent=5 // pred_check_branch
        %1863 = sbr.rel (%p1861) target = $region80
      $region79: #{attention_decoder_lstm_fused.1} parent=5 // pred_region
        %s1864 = ssub.s32 %s22, 2
        // Predicated region
        $region81: #{attention_decoder_lstm_fused.1} parent=79 // pred_check
          %p1865 = pneg %p287
        $region82: #{attention_decoder_lstm_fused.1} parent=79 // pred_check_branch
          %1867 = sbr.rel (%p1865) target = $region84
        $region83: #{attention_decoder_lstm_fused.1} parent=79 // pred_region
          %s1868 = sand.u32 %s272, 1
          %s1869 = scalar_lea.sflag [#allocation5], %s1868
          %s1870 = sand.u32 %s272, 1
          %s1871 = smul.addr %s1870, 16
          %s1872 = scalar_lea.vmem [#allocation4], %s1871
          %1874 = dma.done %s1869, 256
        $region84: #{attention_decoder_lstm_fused.1} parent=79 // pred_fallthru
          _
        // Predicated region
        $region85: #{attention_decoder_lstm_fused.1} parent=79 // pred_check
          %p1875 = pneg %p313
        $region86: #{attention_decoder_lstm_fused.1} parent=79 // pred_check_branch
          %1877 = sbr.rel (%p1875) target = $region88
        $region87: #{attention_decoder_lstm_fused.1} parent=79 // pred_region
          %p1878 = scmp.lt.s32.totalorder %s28, 3
          %s1879 = scalar_select %p1878, %s28, 3
          %s1880 = smul.addr %s1879, 2
          %s1881 = smul.addr %s1880, 8
          %s1882 = scalar_lea.vmem %s12, %s1881
        $region88: #{attention_decoder_lstm_fused.1} parent=79 // pred_fallthru
          _
      $region80: #{attention_decoder_lstm_fused.1} parent=5 // pred_fallthru
        _
    $region6: #{attention_decoder_lstm_fused.1} parent=1 // loop_footer
      %s26 = sadd.s32 1, %s22
    $region7: #{attention_decoder_lstm_fused.1} parent=1 // loop_footer_branch
      %21 = sbr.rel target = $region3
    $region8: #{attention_decoder_lstm_fused.1} parent=1 // loop_exit
      _
    %1883 = vsyncpa [#allocation5], 1
    %s1884 = scalar_lea.sflag [#allocation5], 1
    %1885 = vsyncpa %s1884, 1

</llo_original>
